<compile_context>
chip_gen: v7x
topology: tpu7x:2x2x1
jax: 0.10.0
libtpu: 0.0.40
codegen_flags: <defaults>
</compile_context>

<pallas_src>
import functools

import jax
import jax.numpy as jnp
from jax.experimental import pallas as pl
from jax.experimental.pallas import tpu as pltpu

_LN_EPS = 1e-5


def _round_up(a, b):
    return (a + b - 1) // b * b


def _patch_merge_kernel(x_ref, w_ref, wsum_ref, b_ref, o_ref, acc_ref, *, c4, eps):
    """Fused 2x2 merge + (folded) LayerNorm + Linear for one row-pair tile.

    x_ref    : (th2, 2, W2, 2C)  contiguous row-pair slab.
                                 [:, 0] holds [x0|x2] features, [:, 1] holds [x1|x3].
    w_ref    : (2, 2C, Dp)       gamma-scaled, permuted reduction weight halves.
    wsum_ref : (1, Dp)           column sums of the gamma-scaled weight, f32.
    b_ref    : (1, Dp)           beta @ W^T (folded LayerNorm bias), f32.
    o_ref    : (th2, W2, Dp)
    acc_ref  : (th2*W2, Dp) f32  VMEM accumulator scratch.

    NOTE: on a ragged last H2 block the stale VMEM rows produce garbage stats;
    those rows are masked out on the output store, so valid results are
    unaffected.
    """
    th2, _, w2, c2 = x_ref.shape
    m = th2 * w2
    mm_dtype = w_ref.dtype

    # ---- half a: even input rows -> features [x0 | x2] --------------------
    xa = x_ref[:, 0]                                      # (th2, W2, 2C)
    xa32 = xa.astype(jnp.float32)
    s1 = jnp.sum(xa32, axis=-1, keepdims=True)            # f32 stats
    s2 = jnp.sum(xa32 * xa32, axis=-1, keepdims=True)
    acc_ref[...] = jnp.dot(xa.reshape(m, c2).astype(mm_dtype), w_ref[0],
                           preferred_element_type=jnp.float32)

    # ---- half b: odd input rows -> features [x1 | x3] ---------------------
    xb = x_ref[:, 1]
    xb32 = xb.astype(jnp.float32)
    s1 = s1 + jnp.sum(xb32, axis=-1, keepdims=True)
    s2 = s2 + jnp.sum(xb32 * xb32, axis=-1, keepdims=True)
    acc_ref[...] += jnp.dot(xb.reshape(m, c2).astype(mm_dtype), w_ref[1],
                            preferred_element_type=jnp.float32)

    # ---- LayerNorm folded into a post-matmul epilogue ----------------------
    # out = ((x - mean) * inv) @ Wg + bias
    #     = inv * (x @ Wg - mean * colsum(Wg)) + bias
    inv_n = 1.0 / c4
    mean = s1 * inv_n                                     # (th2, W2, 1) f32
    var = jnp.maximum(s2 * inv_n - mean * mean, 0.0)      # one-pass variance
    inv = jax.lax.rsqrt(var + eps)

    z = acc_ref[...].reshape(th2, w2, -1)                 # (th2, W2, Dp) f32
    wsum = wsum_ref[...].reshape(1, 1, -1)
    bias = b_ref[...].reshape(1, 1, -1)
    o_ref[...] = ((z - mean * wsum) * inv + bias).astype(o_ref.dtype)


@functools.partial(jax.jit, static_argnames=("th2", "vmem_limit", "single_buf"))
def _merge_norm_reduce(x5, w_stack, wsum_row, bias_row, *, th2, vmem_limit,
                       single_buf):
    """x5: (B, H2, 2, W2, 2C); w_stack: (2, 2C, Dp); wsum/bias: (1, Dp)."""
    B, H2, _, W2, C2 = x5.shape
    Dp = w_stack.shape[-1]
    n_h = (H2 + th2 - 1) // th2          # ragged tail OK (rows independent)
    grid = (B, n_h)

    if single_buf:
        # Constant operands: fetched once, single-buffered (no wasted VMEM).
        pmode = pl.Buffered(1)
        w_spec = pl.BlockSpec((2, C2, Dp), lambda b, i: (0, 0, 0),
                              pipeline_mode=pmode)
        wsum_spec = pl.BlockSpec((1, Dp), lambda b, i: (0, 0),
                                 pipeline_mode=pmode)
        bias_spec = pl.BlockSpec((1, Dp), lambda b, i: (0, 0),
                                 pipeline_mode=pmode)
    else:
        w_spec = pl.BlockSpec((2, C2, Dp), lambda b, i: (0, 0, 0))
        wsum_spec = pl.BlockSpec((1, Dp), lambda b, i: (0, 0))
        bias_spec = pl.BlockSpec((1, Dp), lambda b, i: (0, 0))

    kernel = functools.partial(_patch_merge_kernel, c4=float(2 * C2), eps=_LN_EPS)
    return pl.pallas_call(
        kernel,
        out_shape=jax.ShapeDtypeStruct((B, H2, W2, Dp), x5.dtype),
        grid_spec=pltpu.PrefetchScalarGridSpec(
            num_scalar_prefetch=0,
            grid=grid,
            in_specs=[
                # One contiguous (th2, 2, W2, 2C) HBM slab per step (the 2x2
                # gather is purely a layout reinterpretation).
                pl.BlockSpec((None, th2, 2, W2, C2),
                             lambda b, i: (b, i, 0, 0, 0)),
                w_spec, wsum_spec, bias_spec,
            ],
            out_specs=pl.BlockSpec((None, th2, W2, Dp),
                                   lambda b, i: (b, i, 0, 0)),
            scratch_shapes=[pltpu.VMEM((th2 * W2, Dp), jnp.float32)],
        ),
        compiler_params=pltpu.CompilerParams(
            dimension_semantics=("parallel", "parallel"),
            vmem_limit_bytes=vmem_limit,
        ),
    )(x5, w_stack, wsum_row, bias_row)


_SINGLE_BUF_OK = None


def _run_merge(x5, w_stack, wsum_row, bias_row, th2, vmem_limit):
    """Try the single-buffered-weights variant once; fall back if rejected."""
    global _SINGLE_BUF_OK
    if _SINGLE_BUF_OK is None:
        try:
            out = jax.block_until_ready(_merge_norm_reduce(
                x5, w_stack, wsum_row, bias_row,
                th2=th2, vmem_limit=vmem_limit, single_buf=True))
            _SINGLE_BUF_OK = True
            return out
        except Exception:
            _SINGLE_BUF_OK = False
    return _merge_norm_reduce(x5, w_stack, wsum_row, bias_row,
                              th2=th2, vmem_limit=vmem_limit,
                              single_buf=_SINGLE_BUF_OK)


def _prepare_params(params, C, D, Dp, mm_dtype):
    """Fold LN affine into weight / bias / colsum, permute & lane-pad."""
    w_t = params["reduction_weight"].astype(jnp.float32).T             # (4C, D)
    gamma = params["norm_weight"].astype(jnp.float32)                  # (4C,)
    beta = params["norm_bias"].astype(jnp.float32)                     # (4C,)
    w_g = gamma[:, None] * w_t                                         # fold gamma
    bias = beta @ w_t                                                  # fold beta

    # Kernel feature order: half a = [x0 | x2], half b = [x1 | x3].
    wa = jnp.concatenate([w_g[0:C], w_g[2 * C:3 * C]], axis=0)         # (2C, D)
    wb = jnp.concatenate([w_g[C:2 * C], w_g[3 * C:4 * C]], axis=0)     # (2C, D)
    if Dp != D:                                   # lane-dense output stores
        pad = Dp - D
        wa = jnp.pad(wa, ((0, 0), (0, pad)))
        wb = jnp.pad(wb, ((0, 0), (0, pad)))
        bias = jnp.pad(bias, (0, pad))
    w_stack = jnp.stack([wa, wb], axis=0).astype(mm_dtype)             # (2, 2C, Dp)
    # colsum of the (rounded) matmul weight -> exact consistency with the dots.
    wsum_row = jnp.sum(w_stack.astype(jnp.float32), axis=(0, 1)).reshape(1, Dp)
    bias_row = bias.reshape(1, Dp).astype(jnp.float32)
    return w_stack, wsum_row, bias_row


def _vmem_bytes(th2, W2, C2, Dp, x_isz, w_isz, o_isz):
    """Estimate per-step VMEM including in-kernel f32 temporaries."""
    W2p = _round_up(W2, 8)
    C2p = _round_up(C2, 128)
    m = th2 * W2p
    in_tile = th2 * 2 * W2p * C2p * x_isz
    out_tile = m * Dp * o_isz
    w_all = 2 * _round_up(C2, 8) * Dp * w_isz + 2 * 8 * Dp * 4   # single-buffered
    acc = m * Dp * 4                                             # f32 scratch
    # f32 temporaries: one input half (+ its square) and the epilogue products.
    body = 2 * m * C2p * 4 + 2 * m * Dp * 4
    return 2 * (in_tile + out_tile) + w_all + acc + body


def _choose_tile(B, H2, W2, C2, Dp, x_isz, w_isz, o_isz):
    # Generation-aware VMEM: v5e/v6e report 128 MiB per core, v7x 64 MiB.
    try:
        vmem_cap = int(pltpu.get_tpu_info().vmem_capacity_bytes)
    except Exception:
        vmem_cap = 64 << 20                     # conservative (v7x per-TC)
    small_vmem = vmem_cap <= (64 << 20)         # treat as v7x-like (2 TCs)
    budget = (vmem_cap * 2) // 5                # ~40% of VMEM for the estimate
    cap_hi = (vmem_cap * 3) // 4                # vmem_limit ceiling (~75%)

    target_rows = 2048                          # merged patches per grid step
    th2 = max(1, min(H2, max(1, target_rows // max(W2, 1))))
    while th2 > 1 and _vmem_bytes(th2, W2, C2, Dp, x_isz, w_isz, o_isz) > budget:
        th2 = (th2 + 1) // 2

    # Megacore: on 2-TC parts keep >= 8 grid steps when there is enough work.
    if small_vmem:
        while (B * ((H2 + th2 - 1) // th2) < 8 and th2 > 1
               and th2 * W2 >= 512):
            th2 = (th2 + 1) // 2

    # Prefer a divisor of H2 (avoids wasted DMA/compute on a ragged tail tile).
    if H2 % th2 != 0:
        for cand in range(th2 - 1, max(th2 // 2, 1) - 1, -1):
            if H2 % cand == 0:
                th2 = cand
                break

    est = _vmem_bytes(th2, W2, C2, Dp, x_isz, w_isz, o_isz)
    vmem_limit = int(min(cap_hi, max(32 << 20, 2 * est)))
    return th2, vmem_limit


def patch_merging_2d(x, params):
    """Forward pass matching PatchMerging2D.forward.

    x      : (B, H, W, C) channels-last
    params : dict with 'reduction_weight' (D, 4C), 'norm_weight' (4C,),
             'norm_bias' (4C,)
    returns: (B, ceil(H/2), ceil(W/2), D)
    """
    B, H, W, C = x.shape
    D = params["reduction_weight"].shape[0]

    pad_h = H % 2
    pad_w = W % 2
    # Keep W/2 a multiple of 8 so the in-kernel re-tiling of (th2, W2, 2C)
    # into (th2*W2, 2C) rows is free.  Only pads when W % 16 != 0.
    W2_target = _round_up((W + pad_w) // 2, 8)
    pad_w_total = 2 * W2_target - W
    if pad_h or pad_w_total:
        x = jnp.pad(x, ((0, 0), (0, pad_h), (0, pad_w_total), (0, 0)))
    Hp, Wp = x.shape[1], x.shape[2]
    H2, W2 = Hp // 2, Wp // 2
    W2_out = (W + pad_w) // 2                   # logical output width
    C2 = 2 * C
    Dp = _round_up(D, 128)

    mm_dtype = jnp.bfloat16 if x.dtype == jnp.bfloat16 else jnp.float32
    w_stack, wsum_row, bias_row = _prepare_params(params, C, D, Dp, mm_dtype)

    x5 = x.reshape(B, H2, 2, W2, C2)            # free view, no data movement
    th2, vmem_limit = _choose_tile(B, H2, W2, C2, Dp, x.dtype.itemsize,
                                   w_stack.dtype.itemsize, x.dtype.itemsize)

    out = _run_merge(x5, w_stack, wsum_row, bias_row, th2, vmem_limit)

    if W2_out != W2:
        out = out[:, :, :W2_out, :]
    if Dp != D:
        out = out[..., :D]
    return out


def _reference(x, params):
    """Pure-JAX reference for correctness check (mirrors the PyTorch module)."""
    B, H, W, C = x.shape
    if (H % 2 == 1) or (W % 2 == 1):
        x = jnp.pad(x, ((0, 0), (0, H % 2), (0, W % 2), (0, 0)))
    x0 = x[:, 0::2, 0::2, :]
    x1 = x[:, 1::2, 0::2, :]
    x2 = x[:, 0::2, 1::2, :]
    x3 = x[:, 1::2, 1::2, :]
    xm = jnp.concatenate([x0, x1, x2, x3], axis=-1)
    mean = jnp.mean(xm, axis=-1, keepdims=True)
    var = jnp.mean((xm - mean) ** 2, axis=-1, keepdims=True)
    y = (xm - mean) * jax.lax.rsqrt(var + _LN_EPS)
    y = y * params["norm_weight"] + params["norm_bias"]
    return y @ params["reduction_weight"].T


if __name__ == "__main__":
    input_dim = 4
    output_dim = 8
    B, H, W = 2, 16, 16

    key = jax.random.PRNGKey(0)
    kx, kw, kg, kb = jax.random.split(key, 4)

    x = jax.random.normal(kx, (B, H, W, input_dim), dtype=jnp.float32)
    params = {
        # nn.Linear(4*input_dim, output_dim, bias=False): weight is (out, in)
        "reduction_weight": 0.1 * jax.random.normal(
            kw, (output_dim, 4 * input_dim), dtype=jnp.float32),
        # nn.LayerNorm(4*input_dim) affine params
        "norm_weight": 1.0 + 0.05 * jax.random.normal(
            kg, (4 * input_dim,), dtype=jnp.float32),
        "norm_bias": 0.05 * jax.random.normal(
            kb, (4 * input_dim,), dtype=jnp.float32),
    }

    out = jax.block_until_ready(patch_merging_2d(x, params))
    ref = _reference(x, params)
    assert out.shape == (B, H // 2, W // 2, output_dim), out.shape
    assert jnp.allclose(out, ref, atol=5e-5, rtol=5e-5), float(
        jnp.max(jnp.abs(out - ref)))

    # Odd spatial dims exercise the F.pad-equivalent path.
    x_odd = jax.random.normal(kx, (1, 15, 15, input_dim), dtype=jnp.float32)
    out_odd = jax.block_until_ready(patch_merging_2d(x_odd, params))
    ref_odd = _reference(x_odd, params)
    assert out_odd.shape == (1, 8, 8, output_dim), out_odd.shape
    assert jnp.allclose(out_odd, ref_odd, atol=5e-5, rtol=5e-5)

    # bf16 path (bf16 MXU operands, f32 stats/accumulation) — loose tolerance.
    x_bf = x.astype(jnp.bfloat16)
    out_bf = jax.block_until_ready(patch_merging_2d(x_bf, params))
    ref_bf = _reference(x_bf.astype(jnp.float32), params)
    assert out_bf.shape == (B, H // 2, W // 2, output_dim)
    assert jnp.allclose(out_bf.astype(jnp.float32), ref_bf, atol=6e-2, rtol=6e-2)

    print("KERNEL_OK")
</pallas_src>

<mosaic_0001>
module attributes {stable_mosaic.version = 11 : i64} {
  func.func @_patch_merge_kernel(%arg0: i32, %arg1: i32, %arg2: memref<1x8x2x8x8xf32, #tpu.memory_space<vmem>>, %arg3: memref<2x8x128xf32, #tpu.memory_space<vmem>>, %arg4: memref<1x128xf32, #tpu.memory_space<vmem>>, %arg5: memref<1x128xf32, #tpu.memory_space<vmem>>, %arg6: memref<1x8x8x128xf32, #tpu.memory_space<vmem>>, %arg7: memref<64x128xf32, #tpu.memory_space<vmem>>) attributes {dimension_semantics = [#tpu.dimension_semantics<parallel>, #tpu.dimension_semantics<parallel>], iteration_bounds = array<i64: 2, 1>, scalar_prefetch = 0 : i64, scratch_operands = 1 : i64, tpu.core_type = #tpu.core_type<tc>, window_params = [{transform_indices = @transform_0, window_bounds = array<i64: 1, 8, 2, 8, 8>}, {pipeline_mode = #tpu.pipeline_mode<synchronous>, transform_indices = @transform_1, window_bounds = array<i64: 2, 8, 128>}, {pipeline_mode = #tpu.pipeline_mode<synchronous>, transform_indices = @transform_2, window_bounds = array<i64: 1, 128>}, {pipeline_mode = #tpu.pipeline_mode<synchronous>, transform_indices = @transform_3, window_bounds = array<i64: 1, 128>}, {transform_indices = @transform_4, window_bounds = array<i64: 1, 8, 8, 128>}]} {
    %c0 = arith.constant 0 : index
    %c0_0 = arith.constant 0 : index
    %c0_1 = arith.constant 0 : index
    %c0_2 = arith.constant 0 : index
    %c0_3 = arith.constant 0 : index
    %0 = vector.load %arg2[%c0, %c0_0, %c0_1, %c0_2, %c0_3] : memref<1x8x2x8x8xf32, #tpu.memory_space<vmem>>, vector<1x8x1x8x8xf32>
    %1 = vector.shape_cast %0 : vector<1x8x1x8x8xf32> to vector<8x8x8xf32>
    %cst = arith.constant dense<0.000000e+00> : vector<8x8xf32>
    %2 = vector.multi_reduction <add>, %1, %cst [2] : vector<8x8x8xf32> to vector<8x8xf32>
    %3 = vector.shape_cast %2 : vector<8x8xf32> to vector<8x8x1xf32>
    %4 = arith.mulf %1, %1 : vector<8x8x8xf32>
    %cst_4 = arith.constant dense<0.000000e+00> : vector<8x8xf32>
    %5 = vector.multi_reduction <add>, %4, %cst_4 [2] : vector<8x8x8xf32> to vector<8x8xf32>
    %6 = vector.shape_cast %5 : vector<8x8xf32> to vector<8x8x1xf32>
    %7 = vector.shape_cast %1 : vector<8x8x8xf32> to vector<64x8xf32>
    %c0_5 = arith.constant 0 : index
    %c0_6 = arith.constant 0 : index
    %c0_7 = arith.constant 0 : index
    %8 = vector.load %arg3[%c0_5, %c0_6, %c0_7] : memref<2x8x128xf32, #tpu.memory_space<vmem>>, vector<1x8x128xf32>
    %9 = vector.shape_cast %8 : vector<1x8x128xf32> to vector<8x128xf32>
    %cst_8 = arith.constant dense<0.000000e+00> : vector<64x128xf32>
    %10 = tpu.matmul %7, %9, %cst_8 {dimension_numbers = #tpu.dot_dimension_numbers<[1], [0], [0], [1], [0, 0, 1, 1], [], []>} : vector<64x8xf32>, vector<8x128xf32>, vector<64x128xf32> -> vector<64x128xf32>
    %c0_9 = arith.constant 0 : index
    %c0_10 = arith.constant 0 : index
    %11 = vector.load %arg7[%c0_9, %c0_10] : memref<64x128xf32, #tpu.memory_space<vmem>>, vector<64x128xf32>
    tpu.vector_store %arg7[%c0_9, %c0_10], %10 {strides = array<i32>} : memref<64x128xf32, #tpu.memory_space<vmem>>, vector<64x128xf32>,
    %c0_11 = arith.constant 0 : index
    %c0_12 = arith.constant 0 : index
    %c1 = arith.constant 1 : index
    %c0_13 = arith.constant 0 : index
    %c0_14 = arith.constant 0 : index
    %12 = vector.load %arg2[%c0_11, %c0_12, %c1, %c0_13, %c0_14] : memref<1x8x2x8x8xf32, #tpu.memory_space<vmem>>, vector<1x8x1x8x8xf32>
    %13 = vector.shape_cast %12 : vector<1x8x1x8x8xf32> to vector<8x8x8xf32>
    %cst_15 = arith.constant dense<0.000000e+00> : vector<8x8xf32>
    %14 = vector.multi_reduction <add>, %13, %cst_15 [2] : vector<8x8x8xf32> to vector<8x8xf32>
    %15 = vector.shape_cast %14 : vector<8x8xf32> to vector<8x8x1xf32>
    %16 = arith.addf %3, %15 : vector<8x8x1xf32>
    %17 = arith.mulf %13, %13 : vector<8x8x8xf32>
    %cst_16 = arith.constant dense<0.000000e+00> : vector<8x8xf32>
    %18 = vector.multi_reduction <add>, %17, %cst_16 [2] : vector<8x8x8xf32> to vector<8x8xf32>
    %19 = vector.shape_cast %18 : vector<8x8xf32> to vector<8x8x1xf32>
    %20 = arith.addf %6, %19 : vector<8x8x1xf32>
    %c0_17 = arith.constant 0 : index
    %c0_18 = arith.constant 0 : index
    %21 = vector.load %arg7[%c0_17, %c0_18] : memref<64x128xf32, #tpu.memory_space<vmem>>, vector<64x128xf32>
    %22 = vector.shape_cast %13 : vector<8x8x8xf32> to vector<64x8xf32>
    %c1_19 = arith.constant 1 : index
    %c0_20 = arith.constant 0 : index
    %c0_21 = arith.constant 0 : index
    %23 = vector.load %arg3[%c1_19, %c0_20, %c0_21] : memref<2x8x128xf32, #tpu.memory_space<vmem>>, vector<1x8x128xf32>
    %24 = vector.shape_cast %23 : vector<1x8x128xf32> to vector<8x128xf32>
    %cst_22 = arith.constant dense<0.000000e+00> : vector<64x128xf32>
    %25 = tpu.matmul %22, %24, %cst_22 {dimension_numbers = #tpu.dot_dimension_numbers<[1], [0], [0], [1], [0, 0, 1, 1], [], []>} : vector<64x8xf32>, vector<8x128xf32>, vector<64x128xf32> -> vector<64x128xf32>
    %26 = arith.addf %21, %25 : vector<64x128xf32>
    %c0_23 = arith.constant 0 : index
    %c0_24 = arith.constant 0 : index
    %27 = vector.load %arg7[%c0_23, %c0_24] : memref<64x128xf32, #tpu.memory_space<vmem>>, vector<64x128xf32>
    tpu.vector_store %arg7[%c0_23, %c0_24], %26 {strides = array<i32>} : memref<64x128xf32, #tpu.memory_space<vmem>>, vector<64x128xf32>,
    %cst_25 = arith.constant 6.250000e-02 : f32
    %28 = vector.broadcast %cst_25 : f32 to vector<8x8x1xf32>
    %29 = arith.mulf %16, %28 : vector<8x8x1xf32>
    %cst_26 = arith.constant 6.250000e-02 : f32
    %30 = vector.broadcast %cst_26 : f32 to vector<8x8x1xf32>
    %31 = arith.mulf %20, %30 : vector<8x8x1xf32>
    %32 = arith.mulf %29, %29 : vector<8x8x1xf32>
    %33 = arith.subf %31, %32 : vector<8x8x1xf32>
    %cst_27 = arith.constant 0.000000e+00 : f32
    %34 = vector.broadcast %cst_27 : f32 to vector<8x8x1xf32>
    %35 = arith.maximumf %33, %34 : vector<8x8x1xf32>
    %cst_28 = arith.constant 9.99999974E-6 : f32
    %36 = vector.broadcast %cst_28 : f32 to vector<8x8x1xf32>
    %37 = arith.addf %35, %36 : vector<8x8x1xf32>
    %38 = math.rsqrt %37 : vector<8x8x1xf32>
    %c0_29 = arith.constant 0 : index
    %c0_30 = arith.constant 0 : index
    %39 = vector.load %arg7[%c0_29, %c0_30] : memref<64x128xf32, #tpu.memory_space<vmem>>, vector<64x128xf32>
    %40 = vector.shape_cast %39 : vector<64x128xf32> to vector<8x8x128xf32>
    %c0_31 = arith.constant 0 : index
    %c0_32 = arith.constant 0 : index
    %41 = vector.load %arg4[%c0_31, %c0_32] : memref<1x128xf32, #tpu.memory_space<vmem>>, vector<1x128xf32>
    %42 = vector.shape_cast %41 : vector<1x128xf32> to vector<1x1x128xf32>
    %c0_33 = arith.constant 0 : index
    %c0_34 = arith.constant 0 : index
    %43 = vector.load %arg5[%c0_33, %c0_34] : memref<1x128xf32, #tpu.memory_space<vmem>>, vector<1x128xf32>
    %44 = vector.shape_cast %43 : vector<1x128xf32> to vector<1x1x128xf32>
    %45 = vector.broadcast %29 : vector<8x8x1xf32> to vector<8x8x128xf32>
    %46 = vector.broadcast %42 : vector<1x1x128xf32> to vector<8x8x128xf32>
    %47 = arith.mulf %45, %46 : vector<8x8x128xf32>
    %48 = arith.subf %40, %47 : vector<8x8x128xf32>
    %49 = vector.broadcast %38 : vector<8x8x1xf32> to vector<8x8x128xf32>
    %50 = arith.mulf %48, %49 : vector<8x8x128xf32>
    %51 = vector.broadcast %44 : vector<1x1x128xf32> to vector<8x8x128xf32>
    %52 = arith.addf %50, %51 : vector<8x8x128xf32>
    %c0_35 = arith.constant 0 : index
    %c0_36 = arith.constant 0 : index
    %c0_37 = arith.constant 0 : index
    %c0_38 = arith.constant 0 : index
    %53 = vector.load %arg6[%c0_35, %c0_36, %c0_37, %c0_38] : memref<1x8x8x128xf32, #tpu.memory_space<vmem>>, vector<1x8x8x128xf32>
    %54 = vector.shape_cast %53 : vector<1x8x8x128xf32> to vector<8x8x128xf32>
    %55 = vector.shape_cast %52 : vector<8x8x128xf32> to vector<1x8x8x128xf32>
    tpu.vector_store %arg6[%c0_35, %c0_36, %c0_37, %c0_38], %55 {strides = array<i32>} : memref<1x8x8x128xf32, #tpu.memory_space<vmem>>, vector<1x8x8x128xf32>,
    return
  }
  func.func @transform_0(%arg0: i32, %arg1: i32) -> (i32, i32, i32, i32, i32) {
    %c0_i32 = arith.constant 0 : i32
    %c0_i32_0 = arith.constant 0 : i32
    %c0_i32_1 = arith.constant 0 : i32
    %c0_i32_2 = arith.constant 0 : i32
    return %arg0, %arg1, %c0_i32, %c0_i32_0, %c0_i32_1 : i32, i32, i32, i32, i32
  }
  func.func @transform_1(%arg0: i32, %arg1: i32) -> (i32, i32, i32) {
    %c0_i32 = arith.constant 0 : i32
    %c0_i32_0 = arith.constant 0 : i32
    %c0_i32_1 = arith.constant 0 : i32
    %c0_i32_2 = arith.constant 0 : i32
    return %c0_i32, %c0_i32_0, %c0_i32_1 : i32, i32, i32
  }
  func.func @transform_2(%arg0: i32, %arg1: i32) -> (i32, i32) {
    %c0_i32 = arith.constant 0 : i32
    %c0_i32_0 = arith.constant 0 : i32
    %c0_i32_1 = arith.constant 0 : i32
    return %c0_i32, %c0_i32_0 : i32, i32
  }
  func.func @transform_3(%arg0: i32, %arg1: i32) -> (i32, i32) {
    %c0_i32 = arith.constant 0 : i32
    %c0_i32_0 = arith.constant 0 : i32
    %c0_i32_1 = arith.constant 0 : i32
    return %c0_i32, %c0_i32_0 : i32, i32
  }
  func.func @transform_4(%arg0: i32, %arg1: i32) -> (i32, i32, i32, i32) {
    %c0_i32 = arith.constant 0 : i32
    %c0_i32_0 = arith.constant 0 : i32
    %c0_i32_1 = arith.constant 0 : i32
    return %arg0, %arg1, %c0_i32, %c0_i32_0 : i32, i32, i32, i32
  }
}

module attributes {stable_mosaic.version = 11 : i64} {
  func.func @_patch_merge_kernel(%arg0: i32, %arg1: i32, %arg2: memref<1x8x2x8x8xf32, #tpu.memory_space<vmem>>, %arg3: memref<2x8x128xf32, #tpu.memory_space<vmem>>, %arg4: memref<1x128xf32, #tpu.memory_space<vmem>>, %arg5: memref<1x128xf32, #tpu.memory_space<vmem>>, %arg6: memref<1x8x8x128xf32, #tpu.memory_space<vmem>>, %arg7: memref<64x128xf32, #tpu.memory_space<vmem>>) attributes {dimension_semantics = [#tpu.dimension_semantics<parallel>, #tpu.dimension_semantics<parallel>], iteration_bounds = array<i64: 2, 1>, scalar_prefetch = 0 : i64, scratch_operands = 1 : i64, tpu.core_type = #tpu.core_type<tc>, window_params = [{transform_indices = @transform_0, window_bounds = array<i64: 1, 8, 2, 8, 8>}, {pipeline_mode = #tpu.pipeline_mode<synchronous>, transform_indices = @transform_1, window_bounds = array<i64: 2, 8, 128>}, {pipeline_mode = #tpu.pipeline_mode<synchronous>, transform_indices = @transform_2, window_bounds = array<i64: 1, 128>}, {pipeline_mode = #tpu.pipeline_mode<synchronous>, transform_indices = @transform_3, window_bounds = array<i64: 1, 128>}, {transform_indices = @transform_4, window_bounds = array<i64: 1, 8, 8, 128>}]} {
    %c0 = arith.constant 0 : index
    %c0_0 = arith.constant 0 : index
    %c0_1 = arith.constant 0 : index
    %c0_2 = arith.constant 0 : index
    %c0_3 = arith.constant 0 : index
    %0 = vector.load %arg2[%c0, %c0_0, %c0_1, %c0_2, %c0_3] : memref<1x8x2x8x8xf32, #tpu.memory_space<vmem>>, vector<1x8x1x8x8xf32>
    %1 = vector.shape_cast %0 : vector<1x8x1x8x8xf32> to vector<8x8x8xf32>
    %cst = arith.constant dense<0.000000e+00> : vector<8x8xf32>
    %2 = vector.multi_reduction <add>, %1, %cst [2] : vector<8x8x8xf32> to vector<8x8xf32>
    %3 = vector.shape_cast %2 : vector<8x8xf32> to vector<8x8x1xf32>
    %4 = arith.mulf %1, %1 : vector<8x8x8xf32>
    %cst_4 = arith.constant dense<0.000000e+00> : vector<8x8xf32>
    %5 = vector.multi_reduction <add>, %4, %cst_4 [2] : vector<8x8x8xf32> to vector<8x8xf32>
    %6 = vector.shape_cast %5 : vector<8x8xf32> to vector<8x8x1xf32>
    %7 = vector.shape_cast %1 : vector<8x8x8xf32> to vector<64x8xf32>
    %c0_5 = arith.constant 0 : index
    %c0_6 = arith.constant 0 : index
    %c0_7 = arith.constant 0 : index
    %8 = vector.load %arg3[%c0_5, %c0_6, %c0_7] : memref<2x8x128xf32, #tpu.memory_space<vmem>>, vector<1x8x128xf32>
    %9 = vector.shape_cast %8 : vector<1x8x128xf32> to vector<8x128xf32>
    %cst_8 = arith.constant dense<0.000000e+00> : vector<64x128xf32>
    %10 = tpu.matmul %7, %9, %cst_8 {dimension_numbers = #tpu.dot_dimension_numbers<[1], [0], [0], [1], [0, 0, 1, 1], [], []>} : vector<64x8xf32>, vector<8x128xf32>, vector<64x128xf32> -> vector<64x128xf32>
    %c0_9 = arith.constant 0 : index
    %c0_10 = arith.constant 0 : index
    %11 = vector.load %arg7[%c0_9, %c0_10] : memref<64x128xf32, #tpu.memory_space<vmem>>, vector<64x128xf32>
    tpu.vector_store %arg7[%c0_9, %c0_10], %10 {strides = array<i32>} : memref<64x128xf32, #tpu.memory_space<vmem>>, vector<64x128xf32>,
    %c0_11 = arith.constant 0 : index
    %c0_12 = arith.constant 0 : index
    %c1 = arith.constant 1 : index
    %c0_13 = arith.constant 0 : index
    %c0_14 = arith.constant 0 : index
    %12 = vector.load %arg2[%c0_11, %c0_12, %c1, %c0_13, %c0_14] : memref<1x8x2x8x8xf32, #tpu.memory_space<vmem>>, vector<1x8x1x8x8xf32>
    %13 = vector.shape_cast %12 : vector<1x8x1x8x8xf32> to vector<8x8x8xf32>
    %cst_15 = arith.constant dense<0.000000e+00> : vector<8x8xf32>
    %14 = vector.multi_reduction <add>, %13, %cst_15 [2] : vector<8x8x8xf32> to vector<8x8xf32>
    %15 = vector.shape_cast %14 : vector<8x8xf32> to vector<8x8x1xf32>
    %16 = arith.addf %3, %15 : vector<8x8x1xf32>
    %17 = arith.mulf %13, %13 : vector<8x8x8xf32>
    %cst_16 = arith.constant dense<0.000000e+00> : vector<8x8xf32>
    %18 = vector.multi_reduction <add>, %17, %cst_16 [2] : vector<8x8x8xf32> to vector<8x8xf32>
    %19 = vector.shape_cast %18 : vector<8x8xf32> to vector<8x8x1xf32>
    %20 = arith.addf %6, %19 : vector<8x8x1xf32>
    %c0_17 = arith.constant 0 : index
    %c0_18 = arith.constant 0 : index
    %21 = vector.load %arg7[%c0_17, %c0_18] : memref<64x128xf32, #tpu.memory_space<vmem>>, vector<64x128xf32>
    %22 = vector.shape_cast %13 : vector<8x8x8xf32> to vector<64x8xf32>
    %c1_19 = arith.constant 1 : index
    %c0_20 = arith.constant 0 : index
    %c0_21 = arith.constant 0 : index
    %23 = vector.load %arg3[%c1_19, %c0_20, %c0_21] : memref<2x8x128xf32, #tpu.memory_space<vmem>>, vector<1x8x128xf32>
    %24 = vector.shape_cast %23 : vector<1x8x128xf32> to vector<8x128xf32>
    %cst_22 = arith.constant dense<0.000000e+00> : vector<64x128xf32>
    %25 = tpu.matmul %22, %24, %cst_22 {dimension_numbers = #tpu.dot_dimension_numbers<[1], [0], [0], [1], [0, 0, 1, 1], [], []>} : vector<64x8xf32>, vector<8x128xf32>, vector<64x128xf32> -> vector<64x128xf32>
    %26 = arith.addf %21, %25 : vector<64x128xf32>
    %c0_23 = arith.constant 0 : index
    %c0_24 = arith.constant 0 : index
    %27 = vector.load %arg7[%c0_23, %c0_24] : memref<64x128xf32, #tpu.memory_space<vmem>>, vector<64x128xf32>
    tpu.vector_store %arg7[%c0_23, %c0_24], %26 {strides = array<i32>} : memref<64x128xf32, #tpu.memory_space<vmem>>, vector<64x128xf32>,
    %cst_25 = arith.constant 6.250000e-02 : f32
    %28 = vector.broadcast %cst_25 : f32 to vector<8x8x1xf32>
    %29 = arith.mulf %16, %28 : vector<8x8x1xf32>
    %cst_26 = arith.constant 6.250000e-02 : f32
    %30 = vector.broadcast %cst_26 : f32 to vector<8x8x1xf32>
    %31 = arith.mulf %20, %30 : vector<8x8x1xf32>
    %32 = arith.mulf %29, %29 : vector<8x8x1xf32>
    %33 = arith.subf %31, %32 : vector<8x8x1xf32>
    %cst_27 = arith.constant 0.000000e+00 : f32
    %34 = vector.broadcast %cst_27 : f32 to vector<8x8x1xf32>
    %35 = arith.maximumf %33, %34 : vector<8x8x1xf32>
    %cst_28 = arith.constant 9.99999974E-6 : f32
    %36 = vector.broadcast %cst_28 : f32 to vector<8x8x1xf32>
    %37 = arith.addf %35, %36 : vector<8x8x1xf32>
    %38 = math.rsqrt %37 : vector<8x8x1xf32>
    %c0_29 = arith.constant 0 : index
    %c0_30 = arith.constant 0 : index
    %39 = vector.load %arg7[%c0_29, %c0_30] : memref<64x128xf32, #tpu.memory_space<vmem>>, vector<64x128xf32>
    %40 = vector.shape_cast %39 : vector<64x128xf32> to vector<8x8x128xf32>
    %c0_31 = arith.constant 0 : index
    %c0_32 = arith.constant 0 : index
    %41 = vector.load %arg4[%c0_31, %c0_32] : memref<1x128xf32, #tpu.memory_space<vmem>>, vector<1x128xf32>
    %42 = vector.shape_cast %41 : vector<1x128xf32> to vector<1x1x128xf32>
    %c0_33 = arith.constant 0 : index
    %c0_34 = arith.constant 0 : index
    %43 = vector.load %arg5[%c0_33, %c0_34] : memref<1x128xf32, #tpu.memory_space<vmem>>, vector<1x128xf32>
    %44 = vector.shape_cast %43 : vector<1x128xf32> to vector<1x1x128xf32>
    %45 = vector.broadcast %29 : vector<8x8x1xf32> to vector<8x8x128xf32>
    %46 = vector.broadcast %42 : vector<1x1x128xf32> to vector<8x8x128xf32>
    %47 = arith.mulf %45, %46 : vector<8x8x128xf32>
    %48 = arith.subf %40, %47 : vector<8x8x128xf32>
    %49 = vector.broadcast %38 : vector<8x8x1xf32> to vector<8x8x128xf32>
    %50 = arith.mulf %48, %49 : vector<8x8x128xf32>
    %51 = vector.broadcast %44 : vector<1x1x128xf32> to vector<8x8x128xf32>
    %52 = arith.addf %50, %51 : vector<8x8x128xf32>
    %c0_35 = arith.constant 0 : index
    %c0_36 = arith.constant 0 : index
    %c0_37 = arith.constant 0 : index
    %c0_38 = arith.constant 0 : index
    %53 = vector.load %arg6[%c0_35, %c0_36, %c0_37, %c0_38] : memref<1x8x8x128xf32, #tpu.memory_space<vmem>>, vector<1x8x8x128xf32>
    %54 = vector.shape_cast %53 : vector<1x8x8x128xf32> to vector<8x8x128xf32>
    %55 = vector.shape_cast %52 : vector<8x8x128xf32> to vector<1x8x8x128xf32>
    tpu.vector_store %arg6[%c0_35, %c0_36, %c0_37, %c0_38], %55 {strides = array<i32>} : memref<1x8x8x128xf32, #tpu.memory_space<vmem>>, vector<1x8x8x128xf32>,
    return
  }
  func.func @transform_0(%arg0: i32, %arg1: i32) -> (i32, i32, i32, i32, i32) {
    %c0_i32 = arith.constant 0 : i32
    %c0_i32_0 = arith.constant 0 : i32
    %c0_i32_1 = arith.constant 0 : i32
    %c0_i32_2 = arith.constant 0 : i32
    return %arg0, %arg1, %c0_i32, %c0_i32_0, %c0_i32_1 : i32, i32, i32, i32, i32
  }
  func.func @transform_1(%arg0: i32, %arg1: i32) -> (i32, i32, i32) {
    %c0_i32 = arith.constant 0 : i32
    %c0_i32_0 = arith.constant 0 : i32
    %c0_i32_1 = arith.constant 0 : i32
    %c0_i32_2 = arith.constant 0 : i32
    return %c0_i32, %c0_i32_0, %c0_i32_1 : i32, i32, i32
  }
  func.func @transform_2(%arg0: i32, %arg1: i32) -> (i32, i32) {
    %c0_i32 = arith.constant 0 : i32
    %c0_i32_0 = arith.constant 0 : i32
    %c0_i32_1 = arith.constant 0 : i32
    return %c0_i32, %c0_i32_0 : i32, i32
  }
  func.func @transform_3(%arg0: i32, %arg1: i32) -> (i32, i32) {
    %c0_i32 = arith.constant 0 : i32
    %c0_i32_0 = arith.constant 0 : i32
    %c0_i32_1 = arith.constant 0 : i32
    return %c0_i32, %c0_i32_0 : i32, i32
  }
  func.func @transform_4(%arg0: i32, %arg1: i32) -> (i32, i32, i32, i32) {
    %c0_i32 = arith.constant 0 : i32
    %c0_i32_0 = arith.constant 0 : i32
    %c0_i32_1 = arith.constant 0 : i32
    return %arg0, %arg1, %c0_i32, %c0_i32_0 : i32, i32, i32, i32
  }
}

</mosaic_0001>

<llo_original>
// kernel: _merge_norm_reduce.1
$region0: #{_merge_norm_reduce.1}
  #allocation0 [shape = 'u32[]', space=smem, size = 0x4, offset = 0x4, fixed_abs, tag = 'smem constant byte address 0x4 - core index']
  #allocation1 [shape = 'u32[144,128]{1,0:T(1,128)}', space=vmem, size = 0x12000, scoped, tag = 'internal scratch']
  #allocation2 [shape = 'f32[64,128]{1,0:T(8,128)}', space=vmem, size = 0x8000, scoped, tag = 'scratch operand']
  %s0 = inlined_call_operand.hbm [shape: f32[2,8,2,8,8], index: 0, kind: input, shape index: {}]
  %s1 = inlined_call_operand.hbm [shape: f32[2,8,128], index: 1, kind: input, shape index: {}]
  %s2 = inlined_call_operand.vmem [shape: f32[1,128], index: 2, kind: input, shape index: {}]
  %s3 = inlined_call_operand.vmem [shape: f32[1,128], index: 3, kind: input, shape index: {}]
  %s4 = inlined_call_operand.hbm [shape: f32[2,8,8,128], index: 4, kind: output, shape index: {}]
  %s5 = sld [smem:[#allocation0]]
  $region57: #{_merge_norm_reduce.1} parent=0
    _
  %s7 = ssub.s32 1, %s5
  %s8 = scalar_select 0, %s7, %s5
  $region1: #{_merge_norm_reduce.1} parent=0
    #allocation3 [shape = 'u8[131072]{0}', space=vmem, size = 0x20000, scoped, tag = 'input window, operand 0']
    #allocation4 [shape = 's32[2]{0}', space=sflag, size = 0x8, scoped, tag = 'scoped memory for _merge_norm_reduce.1']
    #allocation5 [shape = 's32[2]{0}', space=sflag, size = 0x8, scoped, tag = 'scoped memory for _merge_norm_reduce.1']
    #allocation6 [shape = 'u8[8192]{0}', space=vmem, size = 0x2000, scoped, tag = 'input window, operand 1, single buffered']
    #allocation7 [shape = 's32[1]{0}', space=sflag, size = 0x4, scoped, tag = 'scoped memory for _merge_norm_reduce.1']
    #allocation8 [shape = 'u8[65536]{0}', space=vmem, size = 0x10000, scoped, tag = 'output window, operand 0']
    %9 = vsyncpa [#allocation4], 0
    %s10 = scalar_lea.sflag [#allocation4], 1
    %11 = vsyncpa %s10, 0
    %12 = vsyncpa [#allocation7], 0
    %13 = vsyncpa [#allocation5], 0
    %s14 = scalar_lea.sflag [#allocation5], 1
    %15 = vsyncpa %s14, 0
    loop: start=0, step=1, limit=4
    $region2: #{_merge_norm_reduce.1} parent=1 // loop_pre_header
      _
    $region3: #{_merge_norm_reduce.1} parent=1 // loop_header
      %s17 = sphi 0, %s21
      %p18 = scmp.ge.s32.totalorder %s17, 4
      %s24 = sphi 0, %s36
      %s25 = sphi 0, %s32
      %s26 = sphi 0, %s24
      %s27 = sphi 0, %s25
      %s28 = sphi 0, %s26
      %s29 = sphi 0, %s27
      %s41 = sphi 0, %s43
      %s44 = sphi 0, %s41
      %s45 = sphi 0, %s44
      %s61 = sphi 0, %s45
      %s65 = sphi 0, %s65
      %s67 = sphi 0, %s65
      %s68 = sphi 0, %s67
      %s82 = sphi 0, %s68
      %s86 = sphi 0, %s86
      %s88 = sphi 0, %s86
      %s89 = sphi 0, %s88
      %s103 = sphi 0, %s89
      %s107 = sphi 0, %s107
      %s109 = sphi 0, %s107
      %s110 = sphi 0, %s109
      %s124 = sphi 0, %s110
      %s132 = sphi 0, %s134
      %s135 = sphi 0, %s132
      %s136 = sphi 0, %s135
      %s152 = sphi 0, %s136
    $region4: #{_merge_norm_reduce.1} parent=1 // loop_header_branch
      %20 = sbr.rel (%p18) target = $region8
    $region5: #{_merge_norm_reduce.1} parent=1 // loop_body
      %s22 = ssub.s32 %s17, 1
      %s23 = ssub.s32 %s17, 2
      %s30 = sadd.s32 1, %s25
      %p31 = scmp.ge.s32.totalorder %s30, 1
      %s32 = scalar_select %p31, 0, %s30
      %s33 = sadd.s32 1, %s24
      %s34 = scalar_select %p31, %s33, %s24
      %p35 = scmp.ge.s32.totalorder %s34, 2
      %s36 = scalar_select %p35, 0, %s34
      %s37 = ssub.s32 %s24, %s36
      %s38 = ssub.s32 %s25, %s32
      %s39 = sor.u32 %s37, %s38
      %p40 = scmp.eq.s32.totalorder %s39, 0
      %s42 = sadd.s32 %s41, 1
      %s43 = scalar_select %p40, %s41, %s42
      %p46 = pneg %p40
      %p47 = scmp.eq.s32.totalorder %s17, 1
      %p48 = por %p46, %p47
      %p49 = scmp.ne.s32.totalorder %s41, %s44
      %p50 = scmp.eq.s32.totalorder %s17, 0
      %p51 = por %p49, %p50
      %p52 = scmp.ne.s32.totalorder %s41, %s44
      %p53 = scmp.eq.s32.totalorder %s22, 1
      %p54 = por %p52, %p53
      %p55 = scmp.ne.s32.totalorder %s44, %s45
      %p56 = scmp.eq.s32.totalorder %s22, 0
      %p57 = por %p55, %p56
      %p58 = scmp.ne.s32.totalorder %s44, %s45
      %p59 = scmp.eq.s32.totalorder %s23, 1
      %p60 = por %p58, %p59
      %p62 = scmp.ne.s32.totalorder %s45, %s61
      %p63 = scmp.eq.s32.totalorder %s23, 0
      %p64 = por %p62, %p63
      %s66 = sadd.s32 %s65, 1
      %p69 = scmp.eq.s32.totalorder %s17, 1
      %p70 = scmp.ne.s32.totalorder %s65, %s67
      %p71 = scmp.eq.s32.totalorder %s17, 0
      %p72 = por %p70, %p71
      %p73 = scmp.ne.s32.totalorder %s65, %s67
      %p74 = scmp.eq.s32.totalorder %s22, 1
      %p75 = por %p73, %p74
      %p76 = scmp.ne.s32.totalorder %s67, %s68
      %p77 = scmp.eq.s32.totalorder %s22, 0
      %p78 = por %p76, %p77
      %p79 = scmp.ne.s32.totalorder %s67, %s68
      %p80 = scmp.eq.s32.totalorder %s23, 1
      %p81 = por %p79, %p80
      %p83 = scmp.ne.s32.totalorder %s68, %s82
      %p84 = scmp.eq.s32.totalorder %s23, 0
      %p85 = por %p83, %p84
      %s87 = sadd.s32 %s86, 1
      %p90 = scmp.eq.s32.totalorder %s17, 1
      %p91 = scmp.ne.s32.totalorder %s86, %s88
      %p92 = scmp.eq.s32.totalorder %s17, 0
      %p93 = por %p91, %p92
      %p94 = scmp.ne.s32.totalorder %s86, %s88
      %p95 = scmp.eq.s32.totalorder %s22, 1
      %p96 = por %p94, %p95
      %p97 = scmp.ne.s32.totalorder %s88, %s89
      %p98 = scmp.eq.s32.totalorder %s22, 0
      %p99 = por %p97, %p98
      %p100 = scmp.ne.s32.totalorder %s88, %s89
      %p101 = scmp.eq.s32.totalorder %s23, 1
      %p102 = por %p100, %p101
      %p104 = scmp.ne.s32.totalorder %s89, %s103
      %p105 = scmp.eq.s32.totalorder %s23, 0
      %p106 = por %p104, %p105
      %s108 = sadd.s32 %s107, 1
      %p111 = scmp.eq.s32.totalorder %s17, 1
      %p112 = scmp.ne.s32.totalorder %s107, %s109
      %p113 = scmp.eq.s32.totalorder %s17, 0
      %p114 = por %p112, %p113
      %p115 = scmp.ne.s32.totalorder %s107, %s109
      %p116 = scmp.eq.s32.totalorder %s22, 1
      %p117 = por %p115, %p116
      %p118 = scmp.ne.s32.totalorder %s109, %s110
      %p119 = scmp.eq.s32.totalorder %s22, 0
      %p120 = por %p118, %p119
      %p121 = scmp.ne.s32.totalorder %s109, %s110
      %p122 = scmp.eq.s32.totalorder %s23, 1
      %p123 = por %p121, %p122
      %p125 = scmp.ne.s32.totalorder %s110, %s124
      %p126 = scmp.eq.s32.totalorder %s23, 0
      %p127 = por %p125, %p126
      %s128 = ssub.s32 %s24, %s36
      %s129 = ssub.s32 %s25, %s32
      %s130 = sor.u32 %s128, %s129
      %p131 = scmp.eq.s32.totalorder %s130, 0
      %s133 = sadd.s32 %s132, 1
      %s134 = scalar_select %p131, %s132, %s133
      %p137 = pneg %p131
      %p138 = scmp.eq.s32.totalorder %s17, 1
      %p139 = por %p137, %p138
      %p140 = scmp.ne.s32.totalorder %s132, %s135
      %p141 = scmp.eq.s32.totalorder %s17, 0
      %p142 = por %p140, %p141
      %p143 = scmp.ne.s32.totalorder %s132, %s135
      %p144 = scmp.eq.s32.totalorder %s22, 1
      %p145 = por %p143, %p144
      %p146 = scmp.ne.s32.totalorder %s135, %s136
      %p147 = scmp.eq.s32.totalorder %s22, 0
      %p148 = por %p146, %p147
      %p149 = scmp.ne.s32.totalorder %s135, %s136
      %p150 = scmp.eq.s32.totalorder %s23, 1
      %p151 = por %p149, %p150
      %p153 = scmp.ne.s32.totalorder %s136, %s152
      %p154 = scmp.eq.s32.totalorder %s23, 0
      %p155 = por %p153, %p154
      %p156 = scmp.le.s32.totalorder 1, %s17
      %p157 = scmp.lt.s32.totalorder %s17, 3
      %p158 = pnand %p156, %p157
      %p159 = pneg %p158
      // Predicated region
      $region9: #{_merge_norm_reduce.1} parent=5 // pred_check
        _
      $region10: #{_merge_norm_reduce.1} parent=5 // pred_check_branch
        %161 = sbr.rel (%p158) target = $region12
      $region11: #{_merge_norm_reduce.1} parent=5 // pred_region
        %s162 = ssub.s32 %s17, 1
        // Predicated region
        $region13: #{_merge_norm_reduce.1} parent=11 // pred_check
          %p163 = pneg %p78
        $region14: #{_merge_norm_reduce.1} parent=11 // pred_check_branch
          %165 = sbr.rel (%p163) target = $region16
        $region15: #{_merge_norm_reduce.1} parent=11 // pred_region
          %s167 = ssub.s32 256, 256
          %168 = vsyncadd [#allocation7], %s167
          %s169 = sshll.u32 [#allocation6], 4
          %s170 = int_to_ptr.vmem [resolvable:$true] %s169
          %175 = dma.hbm_to_vmem [thread:$0]  %s1, 256, %s170, [#allocation7], 128, 128, 8
        $region16: #{_merge_norm_reduce.1} parent=11 // pred_fallthru
          _
        // Predicated region
        $region17: #{_merge_norm_reduce.1} parent=11 // pred_check
          %p176 = pneg %p99
        $region18: #{_merge_norm_reduce.1} parent=11 // pred_check_branch
          %178 = sbr.rel (%p176) target = $region20
        $region19: #{_merge_norm_reduce.1} parent=11 // pred_region
          _
        $region20: #{_merge_norm_reduce.1} parent=11 // pred_fallthru
          _
        // Predicated region
        $region21: #{_merge_norm_reduce.1} parent=11 // pred_check
          %p179 = pneg %p120
        $region22: #{_merge_norm_reduce.1} parent=11 // pred_check_branch
          %181 = sbr.rel (%p179) target = $region24
        $region23: #{_merge_norm_reduce.1} parent=11 // pred_region
          _
        $region24: #{_merge_norm_reduce.1} parent=11 // pred_fallthru
          _
      $region12: #{_merge_norm_reduce.1} parent=5 // pred_fallthru
        _
      %p182 = scmp.lt.s32.totalorder %s17, 2
      // Predicated region
      $region25: #{_merge_norm_reduce.1} parent=5 // pred_check
        %p183 = pneg %p182
      $region26: #{_merge_norm_reduce.1} parent=5 // pred_check_branch
        %185 = sbr.rel (%p183) target = $region28
      $region27: #{_merge_norm_reduce.1} parent=5 // pred_region
        // Predicated region
        $region29: #{_merge_norm_reduce.1} parent=27 // pred_check
          %p186 = pneg %p51
        $region30: #{_merge_norm_reduce.1} parent=27 // pred_check_branch
          %188 = sbr.rel (%p186) target = $region32
        $region31: #{_merge_norm_reduce.1} parent=27 // pred_region
          %s189 = sand.u32 %s41, 1
          %s190 = scalar_lea.sflag [#allocation4], %s189
          %s191 = sand.u32 %s41, 1
          %s192 = smul.addr %s191, 128
          %s193 = scalar_lea.vmem [#allocation3], %s192
          %s194 = smul.u32 8, %s25
          %s196 = ssub.s32 2048, 2048
          %197 = vsyncadd %s190, %s196
          %s198 = smul.addr %s194, 2
          %s199 = smul.addr %s24, 16
          %s200 = sadd.s32 %s198, %s199
          %s201 = smul.addr %s200, 128
          %s202 = scalar_lea.hbm %s0, %s201
          %s203 = sshll.u32 %s193, 4
          %s204 = int_to_ptr.vmem [resolvable:$true] %s203
          %209 = dma.hbm_to_vmem [thread:$0]  %s202, 2048, %s204, %s190, 128, 128, 8
        $region32: #{_merge_norm_reduce.1} parent=27 // pred_fallthru
          _
      $region28: #{_merge_norm_reduce.1} parent=5 // pred_fallthru
        _
      %p210 = scmp.le.s32.totalorder 1, %s17
      %p211 = scmp.lt.s32.totalorder %s17, 3
      %p212 = pnand %p210, %p211
      %p213 = pneg %p212
      // Predicated region
      $region33: #{_merge_norm_reduce.1} parent=5 // pred_check
        _
      $region34: #{_merge_norm_reduce.1} parent=5 // pred_check_branch
        %215 = sbr.rel (%p212) target = $region36
      $region35: #{_merge_norm_reduce.1} parent=5 // pred_region
        %s216 = ssub.s32 %s17, 1
        %s217 = sand.u32 %s44, 1
        %s218 = scalar_lea.sflag [#allocation4], %s217
        %s219 = sand.u32 %s44, 1
        %s220 = smul.addr %s219, 128
        %s221 = scalar_lea.vmem [#allocation3], %s220
        // Predicated region
        $region37: #{_merge_norm_reduce.1} parent=35 // pred_check
          %p222 = pneg %p57
        $region38: #{_merge_norm_reduce.1} parent=35 // pred_check_branch
          %224 = sbr.rel (%p222) target = $region40
        $region39: #{_merge_norm_reduce.1} parent=35 // pred_region
          %225 = dma.done %s218, 2048
        $region40: #{_merge_norm_reduce.1} parent=35 // pred_fallthru
          _
        // Predicated region
        $region41: #{_merge_norm_reduce.1} parent=35 // pred_check
          %p226 = pneg %p78
        $region42: #{_merge_norm_reduce.1} parent=35 // pred_check_branch
          %228 = sbr.rel (%p226) target = $region44
        $region43: #{_merge_norm_reduce.1} parent=35 // pred_region
          %229 = dma.done [#allocation7], 256
        $region44: #{_merge_norm_reduce.1} parent=35 // pred_fallthru
          _
        %s230 = sand.u32 %s44, 1
        %s231 = scalar_lea.sflag [#allocation4], %s230
        %s232 = sand.u32 %s44, 1
        %s233 = smul.addr %s232, 128
        %s234 = scalar_lea.vmem [#allocation3], %s233
        %p235 = pneg %p57
        %p236 = pneg %p54
        %p237 = pneg %p78
        %p238 = pneg %p75
        %p239 = pneg %p99
        %p240 = pneg %p96
        %p241 = pneg %p120
        %p242 = pneg %p117
        %p243 = pneg %p148
        %p244 = pneg %p145
        %s245 = sand.u32 %s135, 1
        %s246 = scalar_lea.sflag [#allocation5], %s245
        %s247 = sand.u32 %s135, 1
        %s248 = smul.addr %s247, 64
        %s249 = scalar_lea.vmem [#allocation8], %s248
        %s250 = smul.u32 8, %s27
        %s251 = smul.u32 8, %s27
        %v252 = vld [vmem:[%s221] sm:$0xff]
        %v253 = vld [vmem:[%s221 + $0x10] sm:$0xff]
        %v254 = vld [vmem:[%s221 + $0x20] sm:$0xff]
        %v255 = vld [vmem:[%s221 + $0x30] sm:$0xff]
        %v256 = vld [vmem:[%s221 + $0x40] sm:$0xff]
        %v257 = vld [vmem:[%s221 + $0x50] sm:$0xff]
        %v258 = vld [vmem:[%s221 + $0x60] sm:$0xff]
        %v259 = vld [vmem:[%s221 + $0x70] sm:$0xff]
        %vm260 = vcmask 64512
        %v261 = vsel %vm260, %v252, 0.0
        %262 = vadd.xlane.f32.xlu0 %v261
        %v263 = vpop.xlane.xlu0 %262
        %v264 = vsel %vm260, %v253, 0.0
        %265 = vadd.xlane.f32.xlu0 %v264
        %v266 = vpop.xlane.xlu0 %265
        %v267 = vsel %vm260, %v254, 0.0
        %268 = vadd.xlane.f32.xlu0 %v267
        %v269 = vpop.xlane.xlu0 %268
        %v270 = vsel %vm260, %v255, 0.0
        %271 = vadd.xlane.f32.xlu0 %v270
        %v272 = vpop.xlane.xlu0 %271
        %v273 = vsel %vm260, %v256, 0.0
        %274 = vadd.xlane.f32.xlu0 %v273
        %v275 = vpop.xlane.xlu0 %274
        %v276 = vsel %vm260, %v257, 0.0
        %277 = vadd.xlane.f32.xlu0 %v276
        %v278 = vpop.xlane.xlu0 %277
        %v279 = vsel %vm260, %v258, 0.0
        %280 = vadd.xlane.f32.xlu0 %v279
        %v281 = vpop.xlane.xlu0 %280
        %v282 = vsel %vm260, %v259, 0.0
        %283 = vadd.xlane.f32.xlu0 %v282
        %v284 = vpop.xlane.xlu0 %283
        %v285 = vmul.f32 %v252, %v252
        %v286 = vmul.f32 %v253, %v253
        %v287 = vmul.f32 %v254, %v254
        %v288 = vmul.f32 %v255, %v255
        %v289 = vmul.f32 %v256, %v256
        %v290 = vmul.f32 %v257, %v257
        %v291 = vmul.f32 %v258, %v258
        %v292 = vmul.f32 %v259, %v259
        %v293 = vsel %vm260, %v285, 0.0
        %294 = vadd.xlane.f32.xlu0 %v293
        %v295 = vpop.xlane.xlu0 %294
        %v296 = vsel %vm260, %v286, 0.0
        %297 = vadd.xlane.f32.xlu0 %v296
        %v298 = vpop.xlane.xlu0 %297
        %v299 = vsel %vm260, %v287, 0.0
        %300 = vadd.xlane.f32.xlu0 %v299
        %v301 = vpop.xlane.xlu0 %300
        %v302 = vsel %vm260, %v288, 0.0
        %303 = vadd.xlane.f32.xlu0 %v302
        %v304 = vpop.xlane.xlu0 %303
        %v305 = vsel %vm260, %v289, 0.0
        %306 = vadd.xlane.f32.xlu0 %v305
        %v307 = vpop.xlane.xlu0 %306
        %v308 = vsel %vm260, %v290, 0.0
        %309 = vadd.xlane.f32.xlu0 %v308
        %v310 = vpop.xlane.xlu0 %309
        %v311 = vsel %vm260, %v291, 0.0
        %312 = vadd.xlane.f32.xlu0 %v311
        %v313 = vpop.xlane.xlu0 %312
        %v314 = vsel %vm260, %v292, 0.0
        %315 = vadd.xlane.f32.xlu0 %v314
        %v316 = vpop.xlane.xlu0 %315
        %v317 = vld [vmem:[#allocation6] sm:$0xff]
        %v319 = vsel %vm260, %v252, 0
        %v322 = vsel %vm260, %v253, 0
        %v325 = vsel %vm260, %v254, 0
        %v328 = vsel %vm260, %v255, 0
        %v331 = vsel %vm260, %v256, 0
        %v334 = vsel %vm260, %v257, 0
        %v337 = vsel %vm260, %v258, 0
        %v340 = vsel %vm260, %v259, 0
        %342 = vmatprep.subr.mxu0 0.0
        %343 = vmatpush1.msra.mxu0 %v317
        %344 = vmatprep.subr.mxu0 0.0
        %345 = vmatpush1.msra.mxu0 0.0
        %346 = vmatprep.subr.mxu0 0.0
        %347 = vmatpush1.msra.mxu0 0.0
        %348 = vmatprep.subr.mxu0 0.0
        %349 = vmatpush1.msra.mxu0 0.0
        %350 = vmatprep.subr.mxu0 0.0
        %351 = vmatpush1.msra.mxu0 0.0
        %352 = vmatprep.subr.mxu0 0.0
        %353 = vmatpush1.msra.mxu0 0.0
        %354 = vmatprep.subr.mxu0 0.0
        %355 = vmatpush1.msra.mxu0 0.0
        %356 = vmatprep.subr.mxu0 0.0
        %357 = vmatpush1.msra.mxu0 0.0
        %358 = vmatprep.subr.mxu0 0.0
        %359 = vmatpush1.msra.mxu0 0.0
        %360 = vmatprep.subr.mxu0 0.0
        %361 = vmatpush1.msra.mxu0 0.0
        %362 = vmatprep.subr.mxu0 0.0
        %363 = vmatpush1.msra.mxu0 0.0
        %364 = vmatprep.subr.mxu0 0.0
        %365 = vmatpush1.msra.mxu0 0.0
        %366 = vmatprep.subr.mxu0 0.0
        %367 = vmatpush1.msra.mxu0 0.0
        %368 = vmatprep.subr.mxu0 0.0
        %369 = vmatpush1.msra.mxu0 0.0
        %370 = vmatprep.subr.mxu0 0.0
        %371 = vmatpush1.msra.mxu0 0.0
        %372 = vmatprep.subr.mxu0 0.0
        %373 = vmatpush1.msra.mxu0 0.0
        %374 = vmatprep.subr.mxu0 0.0
        %375 = vmatpush1.msra.mxu0 0.0
        %376 = vmatprep.subr.mxu0 0.0
        %377 = vmatpush1.msra.mxu0 0.0
        %378 = vmatprep.subr.mxu0 0.0
        %379 = vmatpush1.msra.mxu0 0.0
        %380 = vmatprep.subr.mxu0 0.0
        %381 = vmatpush1.msra.mxu0 0.0
        %382 = vmatprep.subr.mxu0 0.0
        %383 = vmatpush1.msra.mxu0 0.0
        %384 = vmatprep.subr.mxu0 0.0
        %385 = vmatpush1.msra.mxu0 0.0
        %386 = vmatprep.subr.mxu0 0.0
        %387 = vmatpush1.msra.mxu0 0.0
        %388 = vmatprep.subr.mxu0 0.0
        %389 = vmatpush1.msra.mxu0 0.0
        %390 = vmatprep.subr.mxu0 0.0
        %391 = vmatpush1.msra.mxu0 0.0
        %392 = vmatprep.subr.mxu0 0.0
        %393 = vmatpush1.msra.mxu0 0.0
        %394 = vmatprep.subr.mxu0 0.0
        %395 = vmatpush1.msra.mxu0 0.0
        %396 = vmatprep.subr.mxu0 0.0
        %397 = vmatpush1.msra.mxu0 0.0
        %398 = vmatprep.subr.mxu0 0.0
        %399 = vmatpush1.msra.mxu0 0.0
        %400 = vmatprep.subr.mxu0 0.0
        %401 = vmatpush1.msra.mxu0 0.0
        %402 = vmatprep.subr.mxu0 0.0
        %403 = vmatpush1.msra.mxu0 0.0
        %404 = vmatprep.subr.mxu0 0.0
        %405 = vmatpush1.msra.mxu0 0.0
        %406 = vmatprep.mubr.f32.mxu0 0.0
        %407 = vmatmul.mubr.f32.gmra.mrb[0].mxu0 %v319
        %v408 = vpop.f32.mrb[0].mxu0
        %v409 = vadd.f32 0.0, %v408
        %v410 = vpop.f32.mrb[0].mxu0
        %411 = vmatprep.mubr.f32.mxu0 0.0
        %412 = vmatmul.mubr.f32.gmra.mrb[0].mxu0 %v322
        %v413 = vpop.f32.mrb[0].mxu0
        %v414 = vadd.f32 0.0, %v413
        %v415 = vpop.f32.mrb[0].mxu0
        %416 = vmatprep.mubr.f32.mxu0 0.0
        %417 = vmatmul.mubr.f32.gmra.mrb[0].mxu0 %v325
        %v418 = vpop.f32.mrb[0].mxu0
        %v419 = vadd.f32 0.0, %v418
        %v420 = vpop.f32.mrb[0].mxu0
        %421 = vmatprep.mubr.f32.mxu0 0.0
        %422 = vmatmul.mubr.f32.gmra.mrb[0].mxu0 %v328
        %v423 = vpop.f32.mrb[0].mxu0
        %v424 = vadd.f32 0.0, %v423
        %v425 = vpop.f32.mrb[0].mxu0
        %426 = vmatprep.mubr.f32.mxu0 0.0
        %427 = vmatmul.mubr.f32.gmra.mrb[0].mxu0 %v331
        %v428 = vpop.f32.mrb[0].mxu0
        %v429 = vadd.f32 0.0, %v428
        %v430 = vpop.f32.mrb[0].mxu0
        %431 = vmatprep.mubr.f32.mxu0 0.0
        %432 = vmatmul.mubr.f32.gmra.mrb[0].mxu0 %v334
        %v433 = vpop.f32.mrb[0].mxu0
        %v434 = vadd.f32 0.0, %v433
        %v435 = vpop.f32.mrb[0].mxu0
        %436 = vmatprep.mubr.f32.mxu0 0.0
        %437 = vmatmul.mubr.f32.gmra.mrb[0].mxu0 %v337
        %v438 = vpop.f32.mrb[0].mxu0
        %v439 = vadd.f32 0.0, %v438
        %v440 = vpop.f32.mrb[0].mxu0
        %441 = vmatprep.mubr.f32.mxu0 0.0
        %442 = vmatmul.mubr.f32.gmra.mrb[0].mxu0 %v340
        %v443 = vpop.f32.mrb[0].mxu0
        %v444 = vadd.f32 0.0, %v443
        %v445 = vpop.f32.mrb[0].mxu0
        %446 = vdwg.mxu0
        %447 = vst [vmem:[#allocation2] sm:$0xff] %v409
        %448 = vst [vmem:[#allocation2 + $0x8] sm:$0xff] %v414
        %449 = vst [vmem:[#allocation2 + $0x10] sm:$0xff] %v419
        %450 = vst [vmem:[#allocation2 + $0x18] sm:$0xff] %v424
        %451 = vst [vmem:[#allocation2 + $0x20] sm:$0xff] %v429
        %452 = vst [vmem:[#allocation2 + $0x28] sm:$0xff] %v434
        %453 = vst [vmem:[#allocation2 + $0x30] sm:$0xff] %v439
        %454 = vst [vmem:[#allocation2 + $0x38] sm:$0xff] %v444
        %s455 = scalar_lea.vmem %s221, 8 [#allocation3]
        %v456 = vld [vmem:[%s455] sm:$0xff]
        %v457 = vld [vmem:[%s455 + $0x10] sm:$0xff]
        %v458 = vld [vmem:[%s455 + $0x20] sm:$0xff]
        %v459 = vld [vmem:[%s455 + $0x30] sm:$0xff]
        %v460 = vld [vmem:[%s455 + $0x40] sm:$0xff]
        %v461 = vld [vmem:[%s455 + $0x50] sm:$0xff]
        %v462 = vld [vmem:[%s455 + $0x60] sm:$0xff]
        %v463 = vld [vmem:[%s455 + $0x70] sm:$0xff]
        %v464 = vsel %vm260, %v456, 0.0
        %465 = vadd.xlane.f32.xlu0 %v464
        %v466 = vpop.xlane.xlu0 %465
        %v467 = vsel %vm260, %v457, 0.0
        %468 = vadd.xlane.f32.xlu0 %v467
        %v469 = vpop.xlane.xlu0 %468
        %v470 = vsel %vm260, %v458, 0.0
        %471 = vadd.xlane.f32.xlu0 %v470
        %v472 = vpop.xlane.xlu0 %471
        %v473 = vsel %vm260, %v459, 0.0
        %474 = vadd.xlane.f32.xlu0 %v473
        %v475 = vpop.xlane.xlu0 %474
        %v476 = vsel %vm260, %v460, 0.0
        %477 = vadd.xlane.f32.xlu0 %v476
        %v478 = vpop.xlane.xlu0 %477
        %v479 = vsel %vm260, %v461, 0.0
        %480 = vadd.xlane.f32.xlu0 %v479
        %v481 = vpop.xlane.xlu0 %480
        %v482 = vsel %vm260, %v462, 0.0
        %483 = vadd.xlane.f32.xlu0 %v482
        %v484 = vpop.xlane.xlu0 %483
        %v485 = vsel %vm260, %v463, 0.0
        %486 = vadd.xlane.f32.xlu0 %v485
        %v487 = vpop.xlane.xlu0 %486
        %v488 = vadd.f32 %v263, %v466
        %v489 = vadd.f32 %v266, %v469
        %v490 = vadd.f32 %v269, %v472
        %v491 = vadd.f32 %v272, %v475
        %v492 = vadd.f32 %v275, %v478
        %v493 = vadd.f32 %v278, %v481
        %v494 = vadd.f32 %v281, %v484
        %v495 = vadd.f32 %v284, %v487
        %v496 = vmul.f32 %v456, %v456
        %v497 = vmul.f32 %v457, %v457
        %v498 = vmul.f32 %v458, %v458
        %v499 = vmul.f32 %v459, %v459
        %v500 = vmul.f32 %v460, %v460
        %v501 = vmul.f32 %v461, %v461
        %v502 = vmul.f32 %v462, %v462
        %v503 = vmul.f32 %v463, %v463
        %v504 = vsel %vm260, %v496, 0.0
        %505 = vadd.xlane.f32.xlu0 %v504
        %v506 = vpop.xlane.xlu0 %505
        %v507 = vsel %vm260, %v497, 0.0
        %508 = vadd.xlane.f32.xlu0 %v507
        %v509 = vpop.xlane.xlu0 %508
        %v510 = vsel %vm260, %v498, 0.0
        %511 = vadd.xlane.f32.xlu0 %v510
        %v512 = vpop.xlane.xlu0 %511
        %v513 = vsel %vm260, %v499, 0.0
        %514 = vadd.xlane.f32.xlu0 %v513
        %v515 = vpop.xlane.xlu0 %514
        %v516 = vsel %vm260, %v500, 0.0
        %517 = vadd.xlane.f32.xlu0 %v516
        %v518 = vpop.xlane.xlu0 %517
        %v519 = vsel %vm260, %v501, 0.0
        %520 = vadd.xlane.f32.xlu0 %v519
        %v521 = vpop.xlane.xlu0 %520
        %v522 = vsel %vm260, %v502, 0.0
        %523 = vadd.xlane.f32.xlu0 %v522
        %v524 = vpop.xlane.xlu0 %523
        %v525 = vsel %vm260, %v503, 0.0
        %526 = vadd.xlane.f32.xlu0 %v525
        %v527 = vpop.xlane.xlu0 %526
        %v528 = vadd.f32 %v295, %v506
        %v529 = vadd.f32 %v298, %v509
        %v530 = vadd.f32 %v301, %v512
        %v531 = vadd.f32 %v304, %v515
        %v532 = vadd.f32 %v307, %v518
        %v533 = vadd.f32 %v310, %v521
        %v534 = vadd.f32 %v313, %v524
        %v535 = vadd.f32 %v316, %v527
        %v536 = vld [vmem:[#allocation2] sm:$0xff]
        %v537 = vld [vmem:[#allocation2 + $0x8] sm:$0xff]
        %v538 = vld [vmem:[#allocation2 + $0x10] sm:$0xff]
        %v539 = vld [vmem:[#allocation2 + $0x18] sm:$0xff]
        %v540 = vld [vmem:[#allocation2 + $0x20] sm:$0xff]
        %v541 = vld [vmem:[#allocation2 + $0x28] sm:$0xff]
        %v542 = vld [vmem:[#allocation2 + $0x30] sm:$0xff]
        %v543 = vld [vmem:[#allocation2 + $0x38] sm:$0xff]
        %s544 = scalar_lea.vmem [#allocation6], 8
        %v545 = vld [vmem:[%s544] sm:$0xff]
        %v547 = vsel %vm260, %v456, 0
        %v550 = vsel %vm260, %v457, 0
        %v553 = vsel %vm260, %v458, 0
        %v556 = vsel %vm260, %v459, 0
        %v559 = vsel %vm260, %v460, 0
        %v562 = vsel %vm260, %v461, 0
        %v565 = vsel %vm260, %v462, 0
        %v568 = vsel %vm260, %v463, 0
        %570 = vmatprep.subr.mxu0 0.0
        %571 = vmatpush1.msra.mxu0 %v545
        %572 = vmatprep.subr.mxu0 0.0
        %573 = vmatpush1.msra.mxu0 0.0
        %574 = vmatprep.subr.mxu0 0.0
        %575 = vmatpush1.msra.mxu0 0.0
        %576 = vmatprep.subr.mxu0 0.0
        %577 = vmatpush1.msra.mxu0 0.0
        %578 = vmatprep.subr.mxu0 0.0
        %579 = vmatpush1.msra.mxu0 0.0
        %580 = vmatprep.subr.mxu0 0.0
        %581 = vmatpush1.msra.mxu0 0.0
        %582 = vmatprep.subr.mxu0 0.0
        %583 = vmatpush1.msra.mxu0 0.0
        %584 = vmatprep.subr.mxu0 0.0
        %585 = vmatpush1.msra.mxu0 0.0
        %586 = vmatprep.subr.mxu0 0.0
        %587 = vmatpush1.msra.mxu0 0.0
        %588 = vmatprep.subr.mxu0 0.0
        %589 = vmatpush1.msra.mxu0 0.0
        %590 = vmatprep.subr.mxu0 0.0
        %591 = vmatpush1.msra.mxu0 0.0
        %592 = vmatprep.subr.mxu0 0.0
        %593 = vmatpush1.msra.mxu0 0.0
        %594 = vmatprep.subr.mxu0 0.0
        %595 = vmatpush1.msra.mxu0 0.0
        %596 = vmatprep.subr.mxu0 0.0
        %597 = vmatpush1.msra.mxu0 0.0
        %598 = vmatprep.subr.mxu0 0.0
        %599 = vmatpush1.msra.mxu0 0.0
        %600 = vmatprep.subr.mxu0 0.0
        %601 = vmatpush1.msra.mxu0 0.0
        %602 = vmatprep.subr.mxu0 0.0
        %603 = vmatpush1.msra.mxu0 0.0
        %604 = vmatprep.subr.mxu0 0.0
        %605 = vmatpush1.msra.mxu0 0.0
        %606 = vmatprep.subr.mxu0 0.0
        %607 = vmatpush1.msra.mxu0 0.0
        %608 = vmatprep.subr.mxu0 0.0
        %609 = vmatpush1.msra.mxu0 0.0
        %610 = vmatprep.subr.mxu0 0.0
        %611 = vmatpush1.msra.mxu0 0.0
        %612 = vmatprep.subr.mxu0 0.0
        %613 = vmatpush1.msra.mxu0 0.0
        %614 = vmatprep.subr.mxu0 0.0
        %615 = vmatpush1.msra.mxu0 0.0
        %616 = vmatprep.subr.mxu0 0.0
        %617 = vmatpush1.msra.mxu0 0.0
        %618 = vmatprep.subr.mxu0 0.0
        %619 = vmatpush1.msra.mxu0 0.0
        %620 = vmatprep.subr.mxu0 0.0
        %621 = vmatpush1.msra.mxu0 0.0
        %622 = vmatprep.subr.mxu0 0.0
        %623 = vmatpush1.msra.mxu0 0.0
        %624 = vmatprep.subr.mxu0 0.0
        %625 = vmatpush1.msra.mxu0 0.0
        %626 = vmatprep.subr.mxu0 0.0
        %627 = vmatpush1.msra.mxu0 0.0
        %628 = vmatprep.subr.mxu0 0.0
        %629 = vmatpush1.msra.mxu0 0.0
        %630 = vmatprep.subr.mxu0 0.0
        %631 = vmatpush1.msra.mxu0 0.0
        %632 = vmatprep.subr.mxu0 0.0
        %633 = vmatpush1.msra.mxu0 0.0
        %634 = vmatprep.mubr.f32.mxu0 0.0
        %635 = vmatmul.mubr.f32.gmra.mrb[0].mxu0 %v547
        %v636 = vpop.f32.mrb[0].mxu0
        %v637 = vadd.f32 0.0, %v636
        %v638 = vpop.f32.mrb[0].mxu0
        %639 = vmatprep.mubr.f32.mxu0 0.0
        %640 = vmatmul.mubr.f32.gmra.mrb[0].mxu0 %v550
        %v641 = vpop.f32.mrb[0].mxu0
        %v642 = vadd.f32 0.0, %v641
        %v643 = vpop.f32.mrb[0].mxu0
        %644 = vmatprep.mubr.f32.mxu0 0.0
        %645 = vmatmul.mubr.f32.gmra.mrb[0].mxu0 %v553
        %v646 = vpop.f32.mrb[0].mxu0
        %v647 = vadd.f32 0.0, %v646
        %v648 = vpop.f32.mrb[0].mxu0
        %649 = vmatprep.mubr.f32.mxu0 0.0
        %650 = vmatmul.mubr.f32.gmra.mrb[0].mxu0 %v556
        %v651 = vpop.f32.mrb[0].mxu0
        %v652 = vadd.f32 0.0, %v651
        %v653 = vpop.f32.mrb[0].mxu0
        %654 = vmatprep.mubr.f32.mxu0 0.0
        %655 = vmatmul.mubr.f32.gmra.mrb[0].mxu0 %v559
        %v656 = vpop.f32.mrb[0].mxu0
        %v657 = vadd.f32 0.0, %v656
        %v658 = vpop.f32.mrb[0].mxu0
        %659 = vmatprep.mubr.f32.mxu0 0.0
        %660 = vmatmul.mubr.f32.gmra.mrb[0].mxu0 %v562
        %v661 = vpop.f32.mrb[0].mxu0
        %v662 = vadd.f32 0.0, %v661
        %v663 = vpop.f32.mrb[0].mxu0
        %664 = vmatprep.mubr.f32.mxu0 0.0
        %665 = vmatmul.mubr.f32.gmra.mrb[0].mxu0 %v565
        %v666 = vpop.f32.mrb[0].mxu0
        %v667 = vadd.f32 0.0, %v666
        %v668 = vpop.f32.mrb[0].mxu0
        %669 = vmatprep.mubr.f32.mxu0 0.0
        %670 = vmatmul.mubr.f32.gmra.mrb[0].mxu0 %v568
        %v671 = vpop.f32.mrb[0].mxu0
        %v672 = vadd.f32 0.0, %v671
        %v673 = vpop.f32.mrb[0].mxu0
        %674 = vdwg.mxu0
        %v675 = vadd.f32 %v536, %v637
        %v676 = vadd.f32 %v537, %v642
        %v677 = vadd.f32 %v538, %v647
        %v678 = vadd.f32 %v539, %v652
        %v679 = vadd.f32 %v540, %v657
        %v680 = vadd.f32 %v541, %v662
        %v681 = vadd.f32 %v542, %v667
        %v682 = vadd.f32 %v543, %v672
        %683 = vst [vmem:[#allocation2] sm:$0xff] %v675
        %684 = vst [vmem:[#allocation2 + $0x8] sm:$0xff] %v676
        %685 = vst [vmem:[#allocation2 + $0x10] sm:$0xff] %v677
        %686 = vst [vmem:[#allocation2 + $0x18] sm:$0xff] %v678
        %687 = vst [vmem:[#allocation2 + $0x20] sm:$0xff] %v679
        %688 = vst [vmem:[#allocation2 + $0x28] sm:$0xff] %v680
        %689 = vst [vmem:[#allocation2 + $0x30] sm:$0xff] %v681
        %690 = vst [vmem:[#allocation2 + $0x38] sm:$0xff] %v682
        %v691 = vmul.f32 %v488, 0.0625
        %v692 = vmul.f32 %v489, 0.0625
        %v693 = vmul.f32 %v490, 0.0625
        %v694 = vmul.f32 %v491, 0.0625
        %v695 = vmul.f32 %v492, 0.0625
        %v696 = vmul.f32 %v493, 0.0625
        %v697 = vmul.f32 %v494, 0.0625
        %v698 = vmul.f32 %v495, 0.0625
        %v699 = vmul.f32 %v528, 0.0625
        %v700 = vmul.f32 %v529, 0.0625
        %v701 = vmul.f32 %v530, 0.0625
        %v702 = vmul.f32 %v531, 0.0625
        %v703 = vmul.f32 %v532, 0.0625
        %v704 = vmul.f32 %v533, 0.0625
        %v705 = vmul.f32 %v534, 0.0625
        %v706 = vmul.f32 %v535, 0.0625
        %v707 = vmul.f32 %v691, %v691
        %v708 = vmul.f32 %v692, %v692
        %v709 = vmul.f32 %v693, %v693
        %v710 = vmul.f32 %v694, %v694
        %v711 = vmul.f32 %v695, %v695
        %v712 = vmul.f32 %v696, %v696
        %v713 = vmul.f32 %v697, %v697
        %v714 = vmul.f32 %v698, %v698
        %v715 = vsub.f32 %v699, %v707
        %v716 = vsub.f32 %v700, %v708
        %v717 = vsub.f32 %v701, %v709
        %v718 = vsub.f32 %v702, %v710
        %v719 = vsub.f32 %v703, %v711
        %v720 = vsub.f32 %v704, %v712
        %v721 = vsub.f32 %v705, %v713
        %v722 = vsub.f32 %v706, %v714
        %v723 = vmax.f32 %v715, 0.0
        %v724 = vmax.f32 %v716, 0.0
        %v725 = vmax.f32 %v717, 0.0
        %v726 = vmax.f32 %v718, 0.0
        %v727 = vmax.f32 %v719, 0.0
        %v728 = vmax.f32 %v720, 0.0
        %v729 = vmax.f32 %v721, 0.0
        %v730 = vmax.f32 %v722, 0.0
        %v731 = vadd.f32 %v723, 1e-05
        %v732 = vadd.f32 %v724, 1e-05
        %v733 = vadd.f32 %v725, 1e-05
        %v734 = vadd.f32 %v726, 1e-05
        %v735 = vadd.f32 %v727, 1e-05
        %v736 = vadd.f32 %v728, 1e-05
        %v737 = vadd.f32 %v729, 1e-05
        %v738 = vadd.f32 %v730, 1e-05
        %v739 = vrsqrt.pop %v731
        %v740 = vrsqrt.pop %v732
        %v741 = vrsqrt.pop %v733
        %v742 = vrsqrt.pop %v734
        %v743 = vrsqrt.pop %v735
        %v744 = vrsqrt.pop %v736
        %v745 = vrsqrt.pop %v737
        %v746 = vrsqrt.pop %v738
        %v747 = vld [vmem:[#allocation2] sm:$0xff]
        %v748 = vld [vmem:[#allocation2 + $0x8] sm:$0xff]
        %v749 = vld [vmem:[#allocation2 + $0x10] sm:$0xff]
        %v750 = vld [vmem:[#allocation2 + $0x18] sm:$0xff]
        %v751 = vld [vmem:[#allocation2 + $0x20] sm:$0xff]
        %v752 = vld [vmem:[#allocation2 + $0x28] sm:$0xff]
        %v753 = vld [vmem:[#allocation2 + $0x30] sm:$0xff]
        %v754 = vld [vmem:[#allocation2 + $0x38] sm:$0xff]
        %v755 = vld [vmem:[%s2] sm:$0x1]
        %v756 = vld [vmem:[%s3] sm:$0x1]
        %v758 = vlaneseq
        %v759 = vshrl.u32 %v758, 7
        %v760 = vsub.s32 0, %v759
        %v761 = vrot.slane %v755, %v760
        %v763 = vmul.f32 %v691, %v761
        %v764 = vmul.f32 %v692, %v761
        %v765 = vmul.f32 %v693, %v761
        %v766 = vmul.f32 %v694, %v761
        %v767 = vmul.f32 %v695, %v761
        %v768 = vmul.f32 %v696, %v761
        %v769 = vmul.f32 %v697, %v761
        %v770 = vmul.f32 %v698, %v761
        %v771 = vsub.f32 %v747, %v763
        %v772 = vsub.f32 %v748, %v764
        %v773 = vsub.f32 %v749, %v765
        %v774 = vsub.f32 %v750, %v766
        %v775 = vsub.f32 %v751, %v767
        %v776 = vsub.f32 %v752, %v768
        %v777 = vsub.f32 %v753, %v769
        %v778 = vsub.f32 %v754, %v770
        %v779 = vmul.f32 %v771, %v739
        %v780 = vmul.f32 %v772, %v740
        %v781 = vmul.f32 %v773, %v741
        %v782 = vmul.f32 %v774, %v742
        %v783 = vmul.f32 %v775, %v743
        %v784 = vmul.f32 %v776, %v744
        %v785 = vmul.f32 %v777, %v745
        %v786 = vmul.f32 %v778, %v746
        %v788 = vlaneseq
        %v789 = vshrl.u32 %v788, 7
        %v790 = vsub.s32 0, %v789
        %v791 = vrot.slane %v756, %v790
        %v793 = vadd.f32 %v779, %v791
        %v794 = vadd.f32 %v780, %v791
        %v795 = vadd.f32 %v781, %v791
        %v796 = vadd.f32 %v782, %v791
        %v797 = vadd.f32 %v783, %v791
        %v798 = vadd.f32 %v784, %v791
        %v799 = vadd.f32 %v785, %v791
        %v800 = vadd.f32 %v786, %v791
        %801 = vst [vmem:[%s249] sm:$0xff] %v793
        %802 = vst [vmem:[%s249 + $0x8] sm:$0xff] %v794
        %803 = vst [vmem:[%s249 + $0x10] sm:$0xff] %v795
        %804 = vst [vmem:[%s249 + $0x18] sm:$0xff] %v796
        %805 = vst [vmem:[%s249 + $0x20] sm:$0xff] %v797
        %806 = vst [vmem:[%s249 + $0x28] sm:$0xff] %v798
        %807 = vst [vmem:[%s249 + $0x30] sm:$0xff] %v799
        %808 = vst [vmem:[%s249 + $0x38] sm:$0xff] %v800
        %s809 = sand.u32 %s135, 1
        %s810 = scalar_lea.sflag [#allocation5], %s809
        %s811 = sand.u32 %s135, 1
        %s812 = smul.addr %s811, 64
        %s813 = scalar_lea.vmem [#allocation8], %s812
        // Predicated region
        $region45: #{_merge_norm_reduce.1} parent=35 // pred_check
          %p814 = pneg %p145
        $region46: #{_merge_norm_reduce.1} parent=35 // pred_check_branch
          %816 = sbr.rel (%p814) target = $region48
        $region47: #{_merge_norm_reduce.1} parent=35 // pred_region
          %s817 = smul.u32 8, %s27
          %s819 = ssub.s32 1024, 1024
          %820 = vsyncadd %s810, %s819
          %s821 = smul.addr %s26, 8
          %s822 = sadd.s32 %s817, %s821
          %s823 = smul.addr %s822, 128
          %s824 = scalar_lea.hbm %s4, %s823
          %s825 = sshll.u32 %s813, 4
          %s826 = int_to_ptr.vmem [resolvable:$true] %s825
          %831 = dma.vmem_to_hbm [thread:$0]  %s826, 1024, %s824, %s810, 128, 128, 8
        $region48: #{_merge_norm_reduce.1} parent=35 // pred_fallthru
          _
      $region36: #{_merge_norm_reduce.1} parent=5 // pred_fallthru
        _
      %p832 = scmp.le.s32.totalorder 2, %s17
      // Predicated region
      $region49: #{_merge_norm_reduce.1} parent=5 // pred_check
        %p833 = pneg %p832
      $region50: #{_merge_norm_reduce.1} parent=5 // pred_check_branch
        %835 = sbr.rel (%p833) target = $region52
      $region51: #{_merge_norm_reduce.1} parent=5 // pred_region
        %s836 = ssub.s32 %s17, 2
        // Predicated region
        $region53: #{_merge_norm_reduce.1} parent=51 // pred_check
          %p837 = pneg %p151
        $region54: #{_merge_norm_reduce.1} parent=51 // pred_check_branch
          %839 = sbr.rel (%p837) target = $region56
        $region55: #{_merge_norm_reduce.1} parent=51 // pred_region
          %s840 = sand.u32 %s136, 1
          %s841 = scalar_lea.sflag [#allocation5], %s840
          %s842 = sand.u32 %s136, 1
          %s843 = smul.addr %s842, 64
          %s844 = scalar_lea.vmem [#allocation8], %s843
          %845 = dma.done %s841, 1024
        $region56: #{_merge_norm_reduce.1} parent=51 // pred_fallthru
          _
      $region52: #{_merge_norm_reduce.1} parent=5 // pred_fallthru
        _
    $region6: #{_merge_norm_reduce.1} parent=1 // loop_footer
      %s21 = sadd.s32 1, %s17
    $region7: #{_merge_norm_reduce.1} parent=1 // loop_footer_branch
      %16 = sbr.rel target = $region3
    $region8: #{_merge_norm_reduce.1} parent=1 // loop_exit
      _
    %846 = vsyncpa [#allocation4], 1
    %s847 = scalar_lea.sflag [#allocation4], 1
    %848 = vsyncpa %s847, 1
    %849 = vsyncpa [#allocation7], 1
    %850 = vsyncpa [#allocation5], 1
    %s851 = scalar_lea.sflag [#allocation5], 1
    %852 = vsyncpa %s851, 1

// kernel: _merge_norm_reduce.1
$region0: #{_merge_norm_reduce.1}
  #allocation0 [shape = 'u32[]', space=smem, size = 0x4, offset = 0x4, fixed_abs, tag = 'smem constant byte address 0x4 - core index']
  #allocation1 [shape = 'u32[144,128]{1,0:T(1,128)}', space=vmem, size = 0x12000, scoped, tag = 'internal scratch']
  #allocation2 [shape = 'f32[64,128]{1,0:T(8,128)}', space=vmem, size = 0x8000, scoped, tag = 'scratch operand']
  %s0 = inlined_call_operand.hbm [shape: f32[2,8,2,8,8], index: 0, kind: input, shape index: {}]
  %s1 = inlined_call_operand.hbm [shape: f32[2,8,128], index: 1, kind: input, shape index: {}]
  %s2 = inlined_call_operand.vmem [shape: f32[1,128], index: 2, kind: input, shape index: {}]
  %s3 = inlined_call_operand.vmem [shape: f32[1,128], index: 3, kind: input, shape index: {}]
  %s4 = inlined_call_operand.hbm [shape: f32[2,8,8,128], index: 4, kind: output, shape index: {}]
  %s5 = sld [smem:[#allocation0]]
  $region57: #{_merge_norm_reduce.1} parent=0
    _
  %s7 = ssub.s32 1, %s5
  %s8 = scalar_select 0, %s7, %s5
  $region1: #{_merge_norm_reduce.1} parent=0
    #allocation3 [shape = 'u8[131072]{0}', space=vmem, size = 0x20000, scoped, tag = 'input window, operand 0']
    #allocation4 [shape = 's32[2]{0}', space=sflag, size = 0x8, scoped, tag = 'scoped memory for _merge_norm_reduce.1']
    #allocation5 [shape = 's32[2]{0}', space=sflag, size = 0x8, scoped, tag = 'scoped memory for _merge_norm_reduce.1']
    #allocation6 [shape = 'u8[8192]{0}', space=vmem, size = 0x2000, scoped, tag = 'input window, operand 1, single buffered']
    #allocation7 [shape = 's32[1]{0}', space=sflag, size = 0x4, scoped, tag = 'scoped memory for _merge_norm_reduce.1']
    #allocation8 [shape = 'u8[65536]{0}', space=vmem, size = 0x10000, scoped, tag = 'output window, operand 0']
    %9 = vsyncpa [#allocation4], 0
    %s10 = scalar_lea.sflag [#allocation4], 1
    %11 = vsyncpa %s10, 0
    %12 = vsyncpa [#allocation7], 0
    %13 = vsyncpa [#allocation5], 0
    %s14 = scalar_lea.sflag [#allocation5], 1
    %15 = vsyncpa %s14, 0
    loop: start=0, step=1, limit=4
    $region2: #{_merge_norm_reduce.1} parent=1 // loop_pre_header
      _
    $region3: #{_merge_norm_reduce.1} parent=1 // loop_header
      %s17 = sphi 0, %s21
      %p18 = scmp.ge.s32.totalorder %s17, 4
      %s24 = sphi 0, %s36
      %s25 = sphi 0, %s32
      %s26 = sphi 0, %s24
      %s27 = sphi 0, %s25
      %s28 = sphi 0, %s26
      %s29 = sphi 0, %s27
      %s41 = sphi 0, %s43
      %s44 = sphi 0, %s41
      %s45 = sphi 0, %s44
      %s61 = sphi 0, %s45
      %s65 = sphi 0, %s65
      %s67 = sphi 0, %s65
      %s68 = sphi 0, %s67
      %s82 = sphi 0, %s68
      %s86 = sphi 0, %s86
      %s88 = sphi 0, %s86
      %s89 = sphi 0, %s88
      %s103 = sphi 0, %s89
      %s107 = sphi 0, %s107
      %s109 = sphi 0, %s107
      %s110 = sphi 0, %s109
      %s124 = sphi 0, %s110
      %s132 = sphi 0, %s134
      %s135 = sphi 0, %s132
      %s136 = sphi 0, %s135
      %s152 = sphi 0, %s136
    $region4: #{_merge_norm_reduce.1} parent=1 // loop_header_branch
      %20 = sbr.rel (%p18) target = $region8
    $region5: #{_merge_norm_reduce.1} parent=1 // loop_body
      %s22 = ssub.s32 %s17, 1
      %s23 = ssub.s32 %s17, 2
      %s30 = sadd.s32 1, %s25
      %p31 = scmp.ge.s32.totalorder %s30, 1
      %s32 = scalar_select %p31, 0, %s30
      %s33 = sadd.s32 1, %s24
      %s34 = scalar_select %p31, %s33, %s24
      %p35 = scmp.ge.s32.totalorder %s34, 2
      %s36 = scalar_select %p35, 0, %s34
      %s37 = ssub.s32 %s24, %s36
      %s38 = ssub.s32 %s25, %s32
      %s39 = sor.u32 %s37, %s38
      %p40 = scmp.eq.s32.totalorder %s39, 0
      %s42 = sadd.s32 %s41, 1
      %s43 = scalar_select %p40, %s41, %s42
      %p46 = pneg %p40
      %p47 = scmp.eq.s32.totalorder %s17, 1
      %p48 = por %p46, %p47
      %p49 = scmp.ne.s32.totalorder %s41, %s44
      %p50 = scmp.eq.s32.totalorder %s17, 0
      %p51 = por %p49, %p50
      %p52 = scmp.ne.s32.totalorder %s41, %s44
      %p53 = scmp.eq.s32.totalorder %s22, 1
      %p54 = por %p52, %p53
      %p55 = scmp.ne.s32.totalorder %s44, %s45
      %p56 = scmp.eq.s32.totalorder %s22, 0
      %p57 = por %p55, %p56
      %p58 = scmp.ne.s32.totalorder %s44, %s45
      %p59 = scmp.eq.s32.totalorder %s23, 1
      %p60 = por %p58, %p59
      %p62 = scmp.ne.s32.totalorder %s45, %s61
      %p63 = scmp.eq.s32.totalorder %s23, 0
      %p64 = por %p62, %p63
      %s66 = sadd.s32 %s65, 1
      %p69 = scmp.eq.s32.totalorder %s17, 1
      %p70 = scmp.ne.s32.totalorder %s65, %s67
      %p71 = scmp.eq.s32.totalorder %s17, 0
      %p72 = por %p70, %p71
      %p73 = scmp.ne.s32.totalorder %s65, %s67
      %p74 = scmp.eq.s32.totalorder %s22, 1
      %p75 = por %p73, %p74
      %p76 = scmp.ne.s32.totalorder %s67, %s68
      %p77 = scmp.eq.s32.totalorder %s22, 0
      %p78 = por %p76, %p77
      %p79 = scmp.ne.s32.totalorder %s67, %s68
      %p80 = scmp.eq.s32.totalorder %s23, 1
      %p81 = por %p79, %p80
      %p83 = scmp.ne.s32.totalorder %s68, %s82
      %p84 = scmp.eq.s32.totalorder %s23, 0
      %p85 = por %p83, %p84
      %s87 = sadd.s32 %s86, 1
      %p90 = scmp.eq.s32.totalorder %s17, 1
      %p91 = scmp.ne.s32.totalorder %s86, %s88
      %p92 = scmp.eq.s32.totalorder %s17, 0
      %p93 = por %p91, %p92
      %p94 = scmp.ne.s32.totalorder %s86, %s88
      %p95 = scmp.eq.s32.totalorder %s22, 1
      %p96 = por %p94, %p95
      %p97 = scmp.ne.s32.totalorder %s88, %s89
      %p98 = scmp.eq.s32.totalorder %s22, 0
      %p99 = por %p97, %p98
      %p100 = scmp.ne.s32.totalorder %s88, %s89
      %p101 = scmp.eq.s32.totalorder %s23, 1
      %p102 = por %p100, %p101
      %p104 = scmp.ne.s32.totalorder %s89, %s103
      %p105 = scmp.eq.s32.totalorder %s23, 0
      %p106 = por %p104, %p105
      %s108 = sadd.s32 %s107, 1
      %p111 = scmp.eq.s32.totalorder %s17, 1
      %p112 = scmp.ne.s32.totalorder %s107, %s109
      %p113 = scmp.eq.s32.totalorder %s17, 0
      %p114 = por %p112, %p113
      %p115 = scmp.ne.s32.totalorder %s107, %s109
      %p116 = scmp.eq.s32.totalorder %s22, 1
      %p117 = por %p115, %p116
      %p118 = scmp.ne.s32.totalorder %s109, %s110
      %p119 = scmp.eq.s32.totalorder %s22, 0
      %p120 = por %p118, %p119
      %p121 = scmp.ne.s32.totalorder %s109, %s110
      %p122 = scmp.eq.s32.totalorder %s23, 1
      %p123 = por %p121, %p122
      %p125 = scmp.ne.s32.totalorder %s110, %s124
      %p126 = scmp.eq.s32.totalorder %s23, 0
      %p127 = por %p125, %p126
      %s128 = ssub.s32 %s24, %s36
      %s129 = ssub.s32 %s25, %s32
      %s130 = sor.u32 %s128, %s129
      %p131 = scmp.eq.s32.totalorder %s130, 0
      %s133 = sadd.s32 %s132, 1
      %s134 = scalar_select %p131, %s132, %s133
      %p137 = pneg %p131
      %p138 = scmp.eq.s32.totalorder %s17, 1
      %p139 = por %p137, %p138
      %p140 = scmp.ne.s32.totalorder %s132, %s135
      %p141 = scmp.eq.s32.totalorder %s17, 0
      %p142 = por %p140, %p141
      %p143 = scmp.ne.s32.totalorder %s132, %s135
      %p144 = scmp.eq.s32.totalorder %s22, 1
      %p145 = por %p143, %p144
      %p146 = scmp.ne.s32.totalorder %s135, %s136
      %p147 = scmp.eq.s32.totalorder %s22, 0
      %p148 = por %p146, %p147
      %p149 = scmp.ne.s32.totalorder %s135, %s136
      %p150 = scmp.eq.s32.totalorder %s23, 1
      %p151 = por %p149, %p150
      %p153 = scmp.ne.s32.totalorder %s136, %s152
      %p154 = scmp.eq.s32.totalorder %s23, 0
      %p155 = por %p153, %p154
      %p156 = scmp.le.s32.totalorder 1, %s17
      %p157 = scmp.lt.s32.totalorder %s17, 3
      %p158 = pnand %p156, %p157
      %p159 = pneg %p158
      // Predicated region
      $region9: #{_merge_norm_reduce.1} parent=5 // pred_check
        _
      $region10: #{_merge_norm_reduce.1} parent=5 // pred_check_branch
        %161 = sbr.rel (%p158) target = $region12
      $region11: #{_merge_norm_reduce.1} parent=5 // pred_region
        %s162 = ssub.s32 %s17, 1
        // Predicated region
        $region13: #{_merge_norm_reduce.1} parent=11 // pred_check
          %p163 = pneg %p78
        $region14: #{_merge_norm_reduce.1} parent=11 // pred_check_branch
          %165 = sbr.rel (%p163) target = $region16
        $region15: #{_merge_norm_reduce.1} parent=11 // pred_region
          %s167 = ssub.s32 256, 256
          %168 = vsyncadd [#allocation7], %s167
          %s169 = sshll.u32 [#allocation6], 4
          %s170 = int_to_ptr.vmem [resolvable:$true] %s169
          %175 = dma.hbm_to_vmem [thread:$0]  %s1, 256, %s170, [#allocation7], 128, 128, 8
        $region16: #{_merge_norm_reduce.1} parent=11 // pred_fallthru
          _
        // Predicated region
        $region17: #{_merge_norm_reduce.1} parent=11 // pred_check
          %p176 = pneg %p99
        $region18: #{_merge_norm_reduce.1} parent=11 // pred_check_branch
          %178 = sbr.rel (%p176) target = $region20
        $region19: #{_merge_norm_reduce.1} parent=11 // pred_region
          _
        $region20: #{_merge_norm_reduce.1} parent=11 // pred_fallthru
          _
        // Predicated region
        $region21: #{_merge_norm_reduce.1} parent=11 // pred_check
          %p179 = pneg %p120
        $region22: #{_merge_norm_reduce.1} parent=11 // pred_check_branch
          %181 = sbr.rel (%p179) target = $region24
        $region23: #{_merge_norm_reduce.1} parent=11 // pred_region
          _
        $region24: #{_merge_norm_reduce.1} parent=11 // pred_fallthru
          _
      $region12: #{_merge_norm_reduce.1} parent=5 // pred_fallthru
        _
      %p182 = scmp.lt.s32.totalorder %s17, 2
      // Predicated region
      $region25: #{_merge_norm_reduce.1} parent=5 // pred_check
        %p183 = pneg %p182
      $region26: #{_merge_norm_reduce.1} parent=5 // pred_check_branch
        %185 = sbr.rel (%p183) target = $region28
      $region27: #{_merge_norm_reduce.1} parent=5 // pred_region
        // Predicated region
        $region29: #{_merge_norm_reduce.1} parent=27 // pred_check
          %p186 = pneg %p51
        $region30: #{_merge_norm_reduce.1} parent=27 // pred_check_branch
          %188 = sbr.rel (%p186) target = $region32
        $region31: #{_merge_norm_reduce.1} parent=27 // pred_region
          %s189 = sand.u32 %s41, 1
          %s190 = scalar_lea.sflag [#allocation4], %s189
          %s191 = sand.u32 %s41, 1
          %s192 = smul.addr %s191, 128
          %s193 = scalar_lea.vmem [#allocation3], %s192
          %s194 = smul.u32 8, %s25
          %s196 = ssub.s32 2048, 2048
          %197 = vsyncadd %s190, %s196
          %s198 = smul.addr %s194, 2
          %s199 = smul.addr %s24, 16
          %s200 = sadd.s32 %s198, %s199
          %s201 = smul.addr %s200, 128
          %s202 = scalar_lea.hbm %s0, %s201
          %s203 = sshll.u32 %s193, 4
          %s204 = int_to_ptr.vmem [resolvable:$true] %s203
          %209 = dma.hbm_to_vmem [thread:$0]  %s202, 2048, %s204, %s190, 128, 128, 8
        $region32: #{_merge_norm_reduce.1} parent=27 // pred_fallthru
          _
      $region28: #{_merge_norm_reduce.1} parent=5 // pred_fallthru
        _
      %p210 = scmp.le.s32.totalorder 1, %s17
      %p211 = scmp.lt.s32.totalorder %s17, 3
      %p212 = pnand %p210, %p211
      %p213 = pneg %p212
      // Predicated region
      $region33: #{_merge_norm_reduce.1} parent=5 // pred_check
        _
      $region34: #{_merge_norm_reduce.1} parent=5 // pred_check_branch
        %215 = sbr.rel (%p212) target = $region36
      $region35: #{_merge_norm_reduce.1} parent=5 // pred_region
        %s216 = ssub.s32 %s17, 1
        %s217 = sand.u32 %s44, 1
        %s218 = scalar_lea.sflag [#allocation4], %s217
        %s219 = sand.u32 %s44, 1
        %s220 = smul.addr %s219, 128
        %s221 = scalar_lea.vmem [#allocation3], %s220
        // Predicated region
        $region37: #{_merge_norm_reduce.1} parent=35 // pred_check
          %p222 = pneg %p57
        $region38: #{_merge_norm_reduce.1} parent=35 // pred_check_branch
          %224 = sbr.rel (%p222) target = $region40
        $region39: #{_merge_norm_reduce.1} parent=35 // pred_region
          %225 = dma.done %s218, 2048
        $region40: #{_merge_norm_reduce.1} parent=35 // pred_fallthru
          _
        // Predicated region
        $region41: #{_merge_norm_reduce.1} parent=35 // pred_check
          %p226 = pneg %p78
        $region42: #{_merge_norm_reduce.1} parent=35 // pred_check_branch
          %228 = sbr.rel (%p226) target = $region44
        $region43: #{_merge_norm_reduce.1} parent=35 // pred_region
          %229 = dma.done [#allocation7], 256
        $region44: #{_merge_norm_reduce.1} parent=35 // pred_fallthru
          _
        %s230 = sand.u32 %s44, 1
        %s231 = scalar_lea.sflag [#allocation4], %s230
        %s232 = sand.u32 %s44, 1
        %s233 = smul.addr %s232, 128
        %s234 = scalar_lea.vmem [#allocation3], %s233
        %p235 = pneg %p57
        %p236 = pneg %p54
        %p237 = pneg %p78
        %p238 = pneg %p75
        %p239 = pneg %p99
        %p240 = pneg %p96
        %p241 = pneg %p120
        %p242 = pneg %p117
        %p243 = pneg %p148
        %p244 = pneg %p145
        %s245 = sand.u32 %s135, 1
        %s246 = scalar_lea.sflag [#allocation5], %s245
        %s247 = sand.u32 %s135, 1
        %s248 = smul.addr %s247, 64
        %s249 = scalar_lea.vmem [#allocation8], %s248
        %s250 = smul.u32 8, %s27
        %s251 = smul.u32 8, %s27
        %v252 = vld [vmem:[%s221] sm:$0xff]
        %v253 = vld [vmem:[%s221 + $0x10] sm:$0xff]
        %v254 = vld [vmem:[%s221 + $0x20] sm:$0xff]
        %v255 = vld [vmem:[%s221 + $0x30] sm:$0xff]
        %v256 = vld [vmem:[%s221 + $0x40] sm:$0xff]
        %v257 = vld [vmem:[%s221 + $0x50] sm:$0xff]
        %v258 = vld [vmem:[%s221 + $0x60] sm:$0xff]
        %v259 = vld [vmem:[%s221 + $0x70] sm:$0xff]
        %vm260 = vcmask 64512
        %v261 = vsel %vm260, %v252, 0.0
        %262 = vadd.xlane.f32.xlu0 %v261
        %v263 = vpop.xlane.xlu0 %262
        %v264 = vsel %vm260, %v253, 0.0
        %265 = vadd.xlane.f32.xlu0 %v264
        %v266 = vpop.xlane.xlu0 %265
        %v267 = vsel %vm260, %v254, 0.0
        %268 = vadd.xlane.f32.xlu0 %v267
        %v269 = vpop.xlane.xlu0 %268
        %v270 = vsel %vm260, %v255, 0.0
        %271 = vadd.xlane.f32.xlu0 %v270
        %v272 = vpop.xlane.xlu0 %271
        %v273 = vsel %vm260, %v256, 0.0
        %274 = vadd.xlane.f32.xlu0 %v273
        %v275 = vpop.xlane.xlu0 %274
        %v276 = vsel %vm260, %v257, 0.0
        %277 = vadd.xlane.f32.xlu0 %v276
        %v278 = vpop.xlane.xlu0 %277
        %v279 = vsel %vm260, %v258, 0.0
        %280 = vadd.xlane.f32.xlu0 %v279
        %v281 = vpop.xlane.xlu0 %280
        %v282 = vsel %vm260, %v259, 0.0
        %283 = vadd.xlane.f32.xlu0 %v282
        %v284 = vpop.xlane.xlu0 %283
        %v285 = vmul.f32 %v252, %v252
        %v286 = vmul.f32 %v253, %v253
        %v287 = vmul.f32 %v254, %v254
        %v288 = vmul.f32 %v255, %v255
        %v289 = vmul.f32 %v256, %v256
        %v290 = vmul.f32 %v257, %v257
        %v291 = vmul.f32 %v258, %v258
        %v292 = vmul.f32 %v259, %v259
        %v293 = vsel %vm260, %v285, 0.0
        %294 = vadd.xlane.f32.xlu0 %v293
        %v295 = vpop.xlane.xlu0 %294
        %v296 = vsel %vm260, %v286, 0.0
        %297 = vadd.xlane.f32.xlu0 %v296
        %v298 = vpop.xlane.xlu0 %297
        %v299 = vsel %vm260, %v287, 0.0
        %300 = vadd.xlane.f32.xlu0 %v299
        %v301 = vpop.xlane.xlu0 %300
        %v302 = vsel %vm260, %v288, 0.0
        %303 = vadd.xlane.f32.xlu0 %v302
        %v304 = vpop.xlane.xlu0 %303
        %v305 = vsel %vm260, %v289, 0.0
        %306 = vadd.xlane.f32.xlu0 %v305
        %v307 = vpop.xlane.xlu0 %306
        %v308 = vsel %vm260, %v290, 0.0
        %309 = vadd.xlane.f32.xlu0 %v308
        %v310 = vpop.xlane.xlu0 %309
        %v311 = vsel %vm260, %v291, 0.0
        %312 = vadd.xlane.f32.xlu0 %v311
        %v313 = vpop.xlane.xlu0 %312
        %v314 = vsel %vm260, %v292, 0.0
        %315 = vadd.xlane.f32.xlu0 %v314
        %v316 = vpop.xlane.xlu0 %315
        %v317 = vld [vmem:[#allocation6] sm:$0xff]
        %v319 = vsel %vm260, %v252, 0
        %v322 = vsel %vm260, %v253, 0
        %v325 = vsel %vm260, %v254, 0
        %v328 = vsel %vm260, %v255, 0
        %v331 = vsel %vm260, %v256, 0
        %v334 = vsel %vm260, %v257, 0
        %v337 = vsel %vm260, %v258, 0
        %v340 = vsel %vm260, %v259, 0
        %342 = vmatprep.subr.mxu0 0.0
        %343 = vmatpush1.msra.mxu0 %v317
        %344 = vmatprep.subr.mxu0 0.0
        %345 = vmatpush1.msra.mxu0 0.0
        %346 = vmatprep.subr.mxu0 0.0
        %347 = vmatpush1.msra.mxu0 0.0
        %348 = vmatprep.subr.mxu0 0.0
        %349 = vmatpush1.msra.mxu0 0.0
        %350 = vmatprep.subr.mxu0 0.0
        %351 = vmatpush1.msra.mxu0 0.0
        %352 = vmatprep.subr.mxu0 0.0
        %353 = vmatpush1.msra.mxu0 0.0
        %354 = vmatprep.subr.mxu0 0.0
        %355 = vmatpush1.msra.mxu0 0.0
        %356 = vmatprep.subr.mxu0 0.0
        %357 = vmatpush1.msra.mxu0 0.0
        %358 = vmatprep.subr.mxu0 0.0
        %359 = vmatpush1.msra.mxu0 0.0
        %360 = vmatprep.subr.mxu0 0.0
        %361 = vmatpush1.msra.mxu0 0.0
        %362 = vmatprep.subr.mxu0 0.0
        %363 = vmatpush1.msra.mxu0 0.0
        %364 = vmatprep.subr.mxu0 0.0
        %365 = vmatpush1.msra.mxu0 0.0
        %366 = vmatprep.subr.mxu0 0.0
        %367 = vmatpush1.msra.mxu0 0.0
        %368 = vmatprep.subr.mxu0 0.0
        %369 = vmatpush1.msra.mxu0 0.0
        %370 = vmatprep.subr.mxu0 0.0
        %371 = vmatpush1.msra.mxu0 0.0
        %372 = vmatprep.subr.mxu0 0.0
        %373 = vmatpush1.msra.mxu0 0.0
        %374 = vmatprep.subr.mxu0 0.0
        %375 = vmatpush1.msra.mxu0 0.0
        %376 = vmatprep.subr.mxu0 0.0
        %377 = vmatpush1.msra.mxu0 0.0
        %378 = vmatprep.subr.mxu0 0.0
        %379 = vmatpush1.msra.mxu0 0.0
        %380 = vmatprep.subr.mxu0 0.0
        %381 = vmatpush1.msra.mxu0 0.0
        %382 = vmatprep.subr.mxu0 0.0
        %383 = vmatpush1.msra.mxu0 0.0
        %384 = vmatprep.subr.mxu0 0.0
        %385 = vmatpush1.msra.mxu0 0.0
        %386 = vmatprep.subr.mxu0 0.0
        %387 = vmatpush1.msra.mxu0 0.0
        %388 = vmatprep.subr.mxu0 0.0
        %389 = vmatpush1.msra.mxu0 0.0
        %390 = vmatprep.subr.mxu0 0.0
        %391 = vmatpush1.msra.mxu0 0.0
        %392 = vmatprep.subr.mxu0 0.0
        %393 = vmatpush1.msra.mxu0 0.0
        %394 = vmatprep.subr.mxu0 0.0
        %395 = vmatpush1.msra.mxu0 0.0
        %396 = vmatprep.subr.mxu0 0.0
        %397 = vmatpush1.msra.mxu0 0.0
        %398 = vmatprep.subr.mxu0 0.0
        %399 = vmatpush1.msra.mxu0 0.0
        %400 = vmatprep.subr.mxu0 0.0
        %401 = vmatpush1.msra.mxu0 0.0
        %402 = vmatprep.subr.mxu0 0.0
        %403 = vmatpush1.msra.mxu0 0.0
        %404 = vmatprep.subr.mxu0 0.0
        %405 = vmatpush1.msra.mxu0 0.0
        %406 = vmatprep.mubr.f32.mxu0 0.0
        %407 = vmatmul.mubr.f32.gmra.mrb[0].mxu0 %v319
        %v408 = vpop.f32.mrb[0].mxu0
        %v409 = vadd.f32 0.0, %v408
        %v410 = vpop.f32.mrb[0].mxu0
        %411 = vmatprep.mubr.f32.mxu0 0.0
        %412 = vmatmul.mubr.f32.gmra.mrb[0].mxu0 %v322
        %v413 = vpop.f32.mrb[0].mxu0
        %v414 = vadd.f32 0.0, %v413
        %v415 = vpop.f32.mrb[0].mxu0
        %416 = vmatprep.mubr.f32.mxu0 0.0
        %417 = vmatmul.mubr.f32.gmra.mrb[0].mxu0 %v325
        %v418 = vpop.f32.mrb[0].mxu0
        %v419 = vadd.f32 0.0, %v418
        %v420 = vpop.f32.mrb[0].mxu0
        %421 = vmatprep.mubr.f32.mxu0 0.0
        %422 = vmatmul.mubr.f32.gmra.mrb[0].mxu0 %v328
        %v423 = vpop.f32.mrb[0].mxu0
        %v424 = vadd.f32 0.0, %v423
        %v425 = vpop.f32.mrb[0].mxu0
        %426 = vmatprep.mubr.f32.mxu0 0.0
        %427 = vmatmul.mubr.f32.gmra.mrb[0].mxu0 %v331
        %v428 = vpop.f32.mrb[0].mxu0
        %v429 = vadd.f32 0.0, %v428
        %v430 = vpop.f32.mrb[0].mxu0
        %431 = vmatprep.mubr.f32.mxu0 0.0
        %432 = vmatmul.mubr.f32.gmra.mrb[0].mxu0 %v334
        %v433 = vpop.f32.mrb[0].mxu0
        %v434 = vadd.f32 0.0, %v433
        %v435 = vpop.f32.mrb[0].mxu0
        %436 = vmatprep.mubr.f32.mxu0 0.0
        %437 = vmatmul.mubr.f32.gmra.mrb[0].mxu0 %v337
        %v438 = vpop.f32.mrb[0].mxu0
        %v439 = vadd.f32 0.0, %v438
        %v440 = vpop.f32.mrb[0].mxu0
        %441 = vmatprep.mubr.f32.mxu0 0.0
        %442 = vmatmul.mubr.f32.gmra.mrb[0].mxu0 %v340
        %v443 = vpop.f32.mrb[0].mxu0
        %v444 = vadd.f32 0.0, %v443
        %v445 = vpop.f32.mrb[0].mxu0
        %446 = vdwg.mxu0
        %447 = vst [vmem:[#allocation2] sm:$0xff] %v409
        %448 = vst [vmem:[#allocation2 + $0x8] sm:$0xff] %v414
        %449 = vst [vmem:[#allocation2 + $0x10] sm:$0xff] %v419
        %450 = vst [vmem:[#allocation2 + $0x18] sm:$0xff] %v424
        %451 = vst [vmem:[#allocation2 + $0x20] sm:$0xff] %v429
        %452 = vst [vmem:[#allocation2 + $0x28] sm:$0xff] %v434
        %453 = vst [vmem:[#allocation2 + $0x30] sm:$0xff] %v439
        %454 = vst [vmem:[#allocation2 + $0x38] sm:$0xff] %v444
        %s455 = scalar_lea.vmem %s221, 8 [#allocation3]
        %v456 = vld [vmem:[%s455] sm:$0xff]
        %v457 = vld [vmem:[%s455 + $0x10] sm:$0xff]
        %v458 = vld [vmem:[%s455 + $0x20] sm:$0xff]
        %v459 = vld [vmem:[%s455 + $0x30] sm:$0xff]
        %v460 = vld [vmem:[%s455 + $0x40] sm:$0xff]
        %v461 = vld [vmem:[%s455 + $0x50] sm:$0xff]
        %v462 = vld [vmem:[%s455 + $0x60] sm:$0xff]
        %v463 = vld [vmem:[%s455 + $0x70] sm:$0xff]
        %v464 = vsel %vm260, %v456, 0.0
        %465 = vadd.xlane.f32.xlu0 %v464
        %v466 = vpop.xlane.xlu0 %465
        %v467 = vsel %vm260, %v457, 0.0
        %468 = vadd.xlane.f32.xlu0 %v467
        %v469 = vpop.xlane.xlu0 %468
        %v470 = vsel %vm260, %v458, 0.0
        %471 = vadd.xlane.f32.xlu0 %v470
        %v472 = vpop.xlane.xlu0 %471
        %v473 = vsel %vm260, %v459, 0.0
        %474 = vadd.xlane.f32.xlu0 %v473
        %v475 = vpop.xlane.xlu0 %474
        %v476 = vsel %vm260, %v460, 0.0
        %477 = vadd.xlane.f32.xlu0 %v476
        %v478 = vpop.xlane.xlu0 %477
        %v479 = vsel %vm260, %v461, 0.0
        %480 = vadd.xlane.f32.xlu0 %v479
        %v481 = vpop.xlane.xlu0 %480
        %v482 = vsel %vm260, %v462, 0.0
        %483 = vadd.xlane.f32.xlu0 %v482
        %v484 = vpop.xlane.xlu0 %483
        %v485 = vsel %vm260, %v463, 0.0
        %486 = vadd.xlane.f32.xlu0 %v485
        %v487 = vpop.xlane.xlu0 %486
        %v488 = vadd.f32 %v263, %v466
        %v489 = vadd.f32 %v266, %v469
        %v490 = vadd.f32 %v269, %v472
        %v491 = vadd.f32 %v272, %v475
        %v492 = vadd.f32 %v275, %v478
        %v493 = vadd.f32 %v278, %v481
        %v494 = vadd.f32 %v281, %v484
        %v495 = vadd.f32 %v284, %v487
        %v496 = vmul.f32 %v456, %v456
        %v497 = vmul.f32 %v457, %v457
        %v498 = vmul.f32 %v458, %v458
        %v499 = vmul.f32 %v459, %v459
        %v500 = vmul.f32 %v460, %v460
        %v501 = vmul.f32 %v461, %v461
        %v502 = vmul.f32 %v462, %v462
        %v503 = vmul.f32 %v463, %v463
        %v504 = vsel %vm260, %v496, 0.0
        %505 = vadd.xlane.f32.xlu0 %v504
        %v506 = vpop.xlane.xlu0 %505
        %v507 = vsel %vm260, %v497, 0.0
        %508 = vadd.xlane.f32.xlu0 %v507
        %v509 = vpop.xlane.xlu0 %508
        %v510 = vsel %vm260, %v498, 0.0
        %511 = vadd.xlane.f32.xlu0 %v510
        %v512 = vpop.xlane.xlu0 %511
        %v513 = vsel %vm260, %v499, 0.0
        %514 = vadd.xlane.f32.xlu0 %v513
        %v515 = vpop.xlane.xlu0 %514
        %v516 = vsel %vm260, %v500, 0.0
        %517 = vadd.xlane.f32.xlu0 %v516
        %v518 = vpop.xlane.xlu0 %517
        %v519 = vsel %vm260, %v501, 0.0
        %520 = vadd.xlane.f32.xlu0 %v519
        %v521 = vpop.xlane.xlu0 %520
        %v522 = vsel %vm260, %v502, 0.0
        %523 = vadd.xlane.f32.xlu0 %v522
        %v524 = vpop.xlane.xlu0 %523
        %v525 = vsel %vm260, %v503, 0.0
        %526 = vadd.xlane.f32.xlu0 %v525
        %v527 = vpop.xlane.xlu0 %526
        %v528 = vadd.f32 %v295, %v506
        %v529 = vadd.f32 %v298, %v509
        %v530 = vadd.f32 %v301, %v512
        %v531 = vadd.f32 %v304, %v515
        %v532 = vadd.f32 %v307, %v518
        %v533 = vadd.f32 %v310, %v521
        %v534 = vadd.f32 %v313, %v524
        %v535 = vadd.f32 %v316, %v527
        %v536 = vld [vmem:[#allocation2] sm:$0xff]
        %v537 = vld [vmem:[#allocation2 + $0x8] sm:$0xff]
        %v538 = vld [vmem:[#allocation2 + $0x10] sm:$0xff]
        %v539 = vld [vmem:[#allocation2 + $0x18] sm:$0xff]
        %v540 = vld [vmem:[#allocation2 + $0x20] sm:$0xff]
        %v541 = vld [vmem:[#allocation2 + $0x28] sm:$0xff]
        %v542 = vld [vmem:[#allocation2 + $0x30] sm:$0xff]
        %v543 = vld [vmem:[#allocation2 + $0x38] sm:$0xff]
        %s544 = scalar_lea.vmem [#allocation6], 8
        %v545 = vld [vmem:[%s544] sm:$0xff]
        %v547 = vsel %vm260, %v456, 0
        %v550 = vsel %vm260, %v457, 0
        %v553 = vsel %vm260, %v458, 0
        %v556 = vsel %vm260, %v459, 0
        %v559 = vsel %vm260, %v460, 0
        %v562 = vsel %vm260, %v461, 0
        %v565 = vsel %vm260, %v462, 0
        %v568 = vsel %vm260, %v463, 0
        %570 = vmatprep.subr.mxu0 0.0
        %571 = vmatpush1.msra.mxu0 %v545
        %572 = vmatprep.subr.mxu0 0.0
        %573 = vmatpush1.msra.mxu0 0.0
        %574 = vmatprep.subr.mxu0 0.0
        %575 = vmatpush1.msra.mxu0 0.0
        %576 = vmatprep.subr.mxu0 0.0
        %577 = vmatpush1.msra.mxu0 0.0
        %578 = vmatprep.subr.mxu0 0.0
        %579 = vmatpush1.msra.mxu0 0.0
        %580 = vmatprep.subr.mxu0 0.0
        %581 = vmatpush1.msra.mxu0 0.0
        %582 = vmatprep.subr.mxu0 0.0
        %583 = vmatpush1.msra.mxu0 0.0
        %584 = vmatprep.subr.mxu0 0.0
        %585 = vmatpush1.msra.mxu0 0.0
        %586 = vmatprep.subr.mxu0 0.0
        %587 = vmatpush1.msra.mxu0 0.0
        %588 = vmatprep.subr.mxu0 0.0
        %589 = vmatpush1.msra.mxu0 0.0
        %590 = vmatprep.subr.mxu0 0.0
        %591 = vmatpush1.msra.mxu0 0.0
        %592 = vmatprep.subr.mxu0 0.0
        %593 = vmatpush1.msra.mxu0 0.0
        %594 = vmatprep.subr.mxu0 0.0
        %595 = vmatpush1.msra.mxu0 0.0
        %596 = vmatprep.subr.mxu0 0.0
        %597 = vmatpush1.msra.mxu0 0.0
        %598 = vmatprep.subr.mxu0 0.0
        %599 = vmatpush1.msra.mxu0 0.0
        %600 = vmatprep.subr.mxu0 0.0
        %601 = vmatpush1.msra.mxu0 0.0
        %602 = vmatprep.subr.mxu0 0.0
        %603 = vmatpush1.msra.mxu0 0.0
        %604 = vmatprep.subr.mxu0 0.0
        %605 = vmatpush1.msra.mxu0 0.0
        %606 = vmatprep.subr.mxu0 0.0
        %607 = vmatpush1.msra.mxu0 0.0
        %608 = vmatprep.subr.mxu0 0.0
        %609 = vmatpush1.msra.mxu0 0.0
        %610 = vmatprep.subr.mxu0 0.0
        %611 = vmatpush1.msra.mxu0 0.0
        %612 = vmatprep.subr.mxu0 0.0
        %613 = vmatpush1.msra.mxu0 0.0
        %614 = vmatprep.subr.mxu0 0.0
        %615 = vmatpush1.msra.mxu0 0.0
        %616 = vmatprep.subr.mxu0 0.0
        %617 = vmatpush1.msra.mxu0 0.0
        %618 = vmatprep.subr.mxu0 0.0
        %619 = vmatpush1.msra.mxu0 0.0
        %620 = vmatprep.subr.mxu0 0.0
        %621 = vmatpush1.msra.mxu0 0.0
        %622 = vmatprep.subr.mxu0 0.0
        %623 = vmatpush1.msra.mxu0 0.0
        %624 = vmatprep.subr.mxu0 0.0
        %625 = vmatpush1.msra.mxu0 0.0
        %626 = vmatprep.subr.mxu0 0.0
        %627 = vmatpush1.msra.mxu0 0.0
        %628 = vmatprep.subr.mxu0 0.0
        %629 = vmatpush1.msra.mxu0 0.0
        %630 = vmatprep.subr.mxu0 0.0
        %631 = vmatpush1.msra.mxu0 0.0
        %632 = vmatprep.subr.mxu0 0.0
        %633 = vmatpush1.msra.mxu0 0.0
        %634 = vmatprep.mubr.f32.mxu0 0.0
        %635 = vmatmul.mubr.f32.gmra.mrb[0].mxu0 %v547
        %v636 = vpop.f32.mrb[0].mxu0
        %v637 = vadd.f32 0.0, %v636
        %v638 = vpop.f32.mrb[0].mxu0
        %639 = vmatprep.mubr.f32.mxu0 0.0
        %640 = vmatmul.mubr.f32.gmra.mrb[0].mxu0 %v550
        %v641 = vpop.f32.mrb[0].mxu0
        %v642 = vadd.f32 0.0, %v641
        %v643 = vpop.f32.mrb[0].mxu0
        %644 = vmatprep.mubr.f32.mxu0 0.0
        %645 = vmatmul.mubr.f32.gmra.mrb[0].mxu0 %v553
        %v646 = vpop.f32.mrb[0].mxu0
        %v647 = vadd.f32 0.0, %v646
        %v648 = vpop.f32.mrb[0].mxu0
        %649 = vmatprep.mubr.f32.mxu0 0.0
        %650 = vmatmul.mubr.f32.gmra.mrb[0].mxu0 %v556
        %v651 = vpop.f32.mrb[0].mxu0
        %v652 = vadd.f32 0.0, %v651
        %v653 = vpop.f32.mrb[0].mxu0
        %654 = vmatprep.mubr.f32.mxu0 0.0
        %655 = vmatmul.mubr.f32.gmra.mrb[0].mxu0 %v559
        %v656 = vpop.f32.mrb[0].mxu0
        %v657 = vadd.f32 0.0, %v656
        %v658 = vpop.f32.mrb[0].mxu0
        %659 = vmatprep.mubr.f32.mxu0 0.0
        %660 = vmatmul.mubr.f32.gmra.mrb[0].mxu0 %v562
        %v661 = vpop.f32.mrb[0].mxu0
        %v662 = vadd.f32 0.0, %v661
        %v663 = vpop.f32.mrb[0].mxu0
        %664 = vmatprep.mubr.f32.mxu0 0.0
        %665 = vmatmul.mubr.f32.gmra.mrb[0].mxu0 %v565
        %v666 = vpop.f32.mrb[0].mxu0
        %v667 = vadd.f32 0.0, %v666
        %v668 = vpop.f32.mrb[0].mxu0
        %669 = vmatprep.mubr.f32.mxu0 0.0
        %670 = vmatmul.mubr.f32.gmra.mrb[0].mxu0 %v568
        %v671 = vpop.f32.mrb[0].mxu0
        %v672 = vadd.f32 0.0, %v671
        %v673 = vpop.f32.mrb[0].mxu0
        %674 = vdwg.mxu0
        %v675 = vadd.f32 %v536, %v637
        %v676 = vadd.f32 %v537, %v642
        %v677 = vadd.f32 %v538, %v647
        %v678 = vadd.f32 %v539, %v652
        %v679 = vadd.f32 %v540, %v657
        %v680 = vadd.f32 %v541, %v662
        %v681 = vadd.f32 %v542, %v667
        %v682 = vadd.f32 %v543, %v672
        %683 = vst [vmem:[#allocation2] sm:$0xff] %v675
        %684 = vst [vmem:[#allocation2 + $0x8] sm:$0xff] %v676
        %685 = vst [vmem:[#allocation2 + $0x10] sm:$0xff] %v677
        %686 = vst [vmem:[#allocation2 + $0x18] sm:$0xff] %v678
        %687 = vst [vmem:[#allocation2 + $0x20] sm:$0xff] %v679
        %688 = vst [vmem:[#allocation2 + $0x28] sm:$0xff] %v680
        %689 = vst [vmem:[#allocation2 + $0x30] sm:$0xff] %v681
        %690 = vst [vmem:[#allocation2 + $0x38] sm:$0xff] %v682
        %v691 = vmul.f32 %v488, 0.0625
        %v692 = vmul.f32 %v489, 0.0625
        %v693 = vmul.f32 %v490, 0.0625
        %v694 = vmul.f32 %v491, 0.0625
        %v695 = vmul.f32 %v492, 0.0625
        %v696 = vmul.f32 %v493, 0.0625
        %v697 = vmul.f32 %v494, 0.0625
        %v698 = vmul.f32 %v495, 0.0625
        %v699 = vmul.f32 %v528, 0.0625
        %v700 = vmul.f32 %v529, 0.0625
        %v701 = vmul.f32 %v530, 0.0625
        %v702 = vmul.f32 %v531, 0.0625
        %v703 = vmul.f32 %v532, 0.0625
        %v704 = vmul.f32 %v533, 0.0625
        %v705 = vmul.f32 %v534, 0.0625
        %v706 = vmul.f32 %v535, 0.0625
        %v707 = vmul.f32 %v691, %v691
        %v708 = vmul.f32 %v692, %v692
        %v709 = vmul.f32 %v693, %v693
        %v710 = vmul.f32 %v694, %v694
        %v711 = vmul.f32 %v695, %v695
        %v712 = vmul.f32 %v696, %v696
        %v713 = vmul.f32 %v697, %v697
        %v714 = vmul.f32 %v698, %v698
        %v715 = vsub.f32 %v699, %v707
        %v716 = vsub.f32 %v700, %v708
        %v717 = vsub.f32 %v701, %v709
        %v718 = vsub.f32 %v702, %v710
        %v719 = vsub.f32 %v703, %v711
        %v720 = vsub.f32 %v704, %v712
        %v721 = vsub.f32 %v705, %v713
        %v722 = vsub.f32 %v706, %v714
        %v723 = vmax.f32 %v715, 0.0
        %v724 = vmax.f32 %v716, 0.0
        %v725 = vmax.f32 %v717, 0.0
        %v726 = vmax.f32 %v718, 0.0
        %v727 = vmax.f32 %v719, 0.0
        %v728 = vmax.f32 %v720, 0.0
        %v729 = vmax.f32 %v721, 0.0
        %v730 = vmax.f32 %v722, 0.0
        %v731 = vadd.f32 %v723, 1e-05
        %v732 = vadd.f32 %v724, 1e-05
        %v733 = vadd.f32 %v725, 1e-05
        %v734 = vadd.f32 %v726, 1e-05
        %v735 = vadd.f32 %v727, 1e-05
        %v736 = vadd.f32 %v728, 1e-05
        %v737 = vadd.f32 %v729, 1e-05
        %v738 = vadd.f32 %v730, 1e-05
        %v739 = vrsqrt.pop %v731
        %v740 = vrsqrt.pop %v732
        %v741 = vrsqrt.pop %v733
        %v742 = vrsqrt.pop %v734
        %v743 = vrsqrt.pop %v735
        %v744 = vrsqrt.pop %v736
        %v745 = vrsqrt.pop %v737
        %v746 = vrsqrt.pop %v738
        %v747 = vld [vmem:[#allocation2] sm:$0xff]
        %v748 = vld [vmem:[#allocation2 + $0x8] sm:$0xff]
        %v749 = vld [vmem:[#allocation2 + $0x10] sm:$0xff]
        %v750 = vld [vmem:[#allocation2 + $0x18] sm:$0xff]
        %v751 = vld [vmem:[#allocation2 + $0x20] sm:$0xff]
        %v752 = vld [vmem:[#allocation2 + $0x28] sm:$0xff]
        %v753 = vld [vmem:[#allocation2 + $0x30] sm:$0xff]
        %v754 = vld [vmem:[#allocation2 + $0x38] sm:$0xff]
        %v755 = vld [vmem:[%s2] sm:$0x1]
        %v756 = vld [vmem:[%s3] sm:$0x1]
        %v758 = vlaneseq
        %v759 = vshrl.u32 %v758, 7
        %v760 = vsub.s32 0, %v759
        %v761 = vrot.slane %v755, %v760
        %v763 = vmul.f32 %v691, %v761
        %v764 = vmul.f32 %v692, %v761
        %v765 = vmul.f32 %v693, %v761
        %v766 = vmul.f32 %v694, %v761
        %v767 = vmul.f32 %v695, %v761
        %v768 = vmul.f32 %v696, %v761
        %v769 = vmul.f32 %v697, %v761
        %v770 = vmul.f32 %v698, %v761
        %v771 = vsub.f32 %v747, %v763
        %v772 = vsub.f32 %v748, %v764
        %v773 = vsub.f32 %v749, %v765
        %v774 = vsub.f32 %v750, %v766
        %v775 = vsub.f32 %v751, %v767
        %v776 = vsub.f32 %v752, %v768
        %v777 = vsub.f32 %v753, %v769
        %v778 = vsub.f32 %v754, %v770
        %v779 = vmul.f32 %v771, %v739
        %v780 = vmul.f32 %v772, %v740
        %v781 = vmul.f32 %v773, %v741
        %v782 = vmul.f32 %v774, %v742
        %v783 = vmul.f32 %v775, %v743
        %v784 = vmul.f32 %v776, %v744
        %v785 = vmul.f32 %v777, %v745
        %v786 = vmul.f32 %v778, %v746
        %v788 = vlaneseq
        %v789 = vshrl.u32 %v788, 7
        %v790 = vsub.s32 0, %v789
        %v791 = vrot.slane %v756, %v790
        %v793 = vadd.f32 %v779, %v791
        %v794 = vadd.f32 %v780, %v791
        %v795 = vadd.f32 %v781, %v791
        %v796 = vadd.f32 %v782, %v791
        %v797 = vadd.f32 %v783, %v791
        %v798 = vadd.f32 %v784, %v791
        %v799 = vadd.f32 %v785, %v791
        %v800 = vadd.f32 %v786, %v791
        %801 = vst [vmem:[%s249] sm:$0xff] %v793
        %802 = vst [vmem:[%s249 + $0x8] sm:$0xff] %v794
        %803 = vst [vmem:[%s249 + $0x10] sm:$0xff] %v795
        %804 = vst [vmem:[%s249 + $0x18] sm:$0xff] %v796
        %805 = vst [vmem:[%s249 + $0x20] sm:$0xff] %v797
        %806 = vst [vmem:[%s249 + $0x28] sm:$0xff] %v798
        %807 = vst [vmem:[%s249 + $0x30] sm:$0xff] %v799
        %808 = vst [vmem:[%s249 + $0x38] sm:$0xff] %v800
        %s809 = sand.u32 %s135, 1
        %s810 = scalar_lea.sflag [#allocation5], %s809
        %s811 = sand.u32 %s135, 1
        %s812 = smul.addr %s811, 64
        %s813 = scalar_lea.vmem [#allocation8], %s812
        // Predicated region
        $region45: #{_merge_norm_reduce.1} parent=35 // pred_check
          %p814 = pneg %p145
        $region46: #{_merge_norm_reduce.1} parent=35 // pred_check_branch
          %816 = sbr.rel (%p814) target = $region48
        $region47: #{_merge_norm_reduce.1} parent=35 // pred_region
          %s817 = smul.u32 8, %s27
          %s819 = ssub.s32 1024, 1024
          %820 = vsyncadd %s810, %s819
          %s821 = smul.addr %s26, 8
          %s822 = sadd.s32 %s817, %s821
          %s823 = smul.addr %s822, 128
          %s824 = scalar_lea.hbm %s4, %s823
          %s825 = sshll.u32 %s813, 4
          %s826 = int_to_ptr.vmem [resolvable:$true] %s825
          %831 = dma.vmem_to_hbm [thread:$0]  %s826, 1024, %s824, %s810, 128, 128, 8
        $region48: #{_merge_norm_reduce.1} parent=35 // pred_fallthru
          _
      $region36: #{_merge_norm_reduce.1} parent=5 // pred_fallthru
        _
      %p832 = scmp.le.s32.totalorder 2, %s17
      // Predicated region
      $region49: #{_merge_norm_reduce.1} parent=5 // pred_check
        %p833 = pneg %p832
      $region50: #{_merge_norm_reduce.1} parent=5 // pred_check_branch
        %835 = sbr.rel (%p833) target = $region52
      $region51: #{_merge_norm_reduce.1} parent=5 // pred_region
        %s836 = ssub.s32 %s17, 2
        // Predicated region
        $region53: #{_merge_norm_reduce.1} parent=51 // pred_check
          %p837 = pneg %p151
        $region54: #{_merge_norm_reduce.1} parent=51 // pred_check_branch
          %839 = sbr.rel (%p837) target = $region56
        $region55: #{_merge_norm_reduce.1} parent=51 // pred_region
          %s840 = sand.u32 %s136, 1
          %s841 = scalar_lea.sflag [#allocation5], %s840
          %s842 = sand.u32 %s136, 1
          %s843 = smul.addr %s842, 64
          %s844 = scalar_lea.vmem [#allocation8], %s843
          %845 = dma.done %s841, 1024
        $region56: #{_merge_norm_reduce.1} parent=51 // pred_fallthru
          _
      $region52: #{_merge_norm_reduce.1} parent=5 // pred_fallthru
        _
    $region6: #{_merge_norm_reduce.1} parent=1 // loop_footer
      %s21 = sadd.s32 1, %s17
    $region7: #{_merge_norm_reduce.1} parent=1 // loop_footer_branch
      %16 = sbr.rel target = $region3
    $region8: #{_merge_norm_reduce.1} parent=1 // loop_exit
      _
    %846 = vsyncpa [#allocation4], 1
    %s847 = scalar_lea.sflag [#allocation4], 1
    %848 = vsyncpa %s847, 1
    %849 = vsyncpa [#allocation7], 1
    %850 = vsyncpa [#allocation5], 1
    %s851 = scalar_lea.sflag [#allocation5], 1
    %852 = vsyncpa %s851, 1

</llo_original>
